<compile_context>
chip_gen: v6e
topology: v6e:2x2x1
jax: 0.10.0
libtpu: 0.0.40
codegen_flags: <defaults>
</compile_context>

<pallas_src>
import functools

import jax
import jax.numpy as jnp
from jax import lax
from jax.experimental import pallas as pl
from jax.experimental.pallas import tpu as pltpu

BN_EPS = 1e-5

# 128-class tiles keep every block (8,128)-aligned at these demo shapes; for
# production image sizes tm/tk would be bumped to 256-512 within the per-chip
# VMEM budget (v5e 16 MiB scoped default, v7x 64 MiB physical).
TM, TN, TK = 128, 128, 128


# ----------------------------- Pallas kernels ------------------------------

def _mm_bn_kernel(x_ref, w_ref, s_ref, b_ref, o_ref, acc_ref, *, relu):
    """(tm,tk)@(tk,tn) tile matmul, K reduction on grid axis 2, fused BN/ReLU."""
    @pl.when(pl.program_id(2) == 0)
    def _init():
        acc_ref[...] = jnp.zeros_like(acc_ref)

    acc_ref[...] += jnp.dot(x_ref[...], w_ref[...],
                            preferred_element_type=jnp.float32)

    @pl.when(pl.program_id(2) == pl.num_programs(2) - 1)
    def _finalize():
        out = acc_ref[...] * s_ref[...] + b_ref[...]
        if relu:
            out = jnp.maximum(out, 0.0)
        o_ref[...] = out.astype(o_ref.dtype)


def _mm_bn_res_kernel(x_ref, w_ref, s_ref, b_ref, r_ref, o_ref, acc_ref, *, relu):
    """Same as _mm_bn_kernel plus fused residual add (f32) before the ReLU."""
    @pl.when(pl.program_id(2) == 0)
    def _init():
        acc_ref[...] = jnp.zeros_like(acc_ref)

    acc_ref[...] += jnp.dot(x_ref[...], w_ref[...],
                            preferred_element_type=jnp.float32)

    @pl.when(pl.program_id(2) == pl.num_programs(2) - 1)
    def _finalize():
        out = acc_ref[...] * s_ref[...] + b_ref[...] + r_ref[...].astype(jnp.float32)
        if relu:
            out = jnp.maximum(out, 0.0)
        o_ref[...] = out.astype(o_ref.dtype)


# ------------------------------ matmul wrapper ------------------------------

def _pad_axis(a, axis, mult):
    pad = (-a.shape[axis]) % mult
    if pad == 0:
        return a
    widths = [(0, 0)] * a.ndim
    widths[axis] = (0, pad)
    return jnp.pad(a, widths)


def fused_matmul_bn(lhs, w2d, scale, bias, residual=None, relu=True):
    """act((lhs @ w2d) * scale + bias (+ residual)) with bf16 MXU / f32 acc.

    lhs: [M, K] activations (cast to bf16), w2d: [K, N] weights,
    scale/bias: [N] folded BatchNorm affine (f32),
    residual: optional [M, N] f32 added before the ReLU.  Returns [M, N] f32.
    """
    m, k = lhs.shape
    n = w2d.shape[1]

    lhs_p = _pad_axis(_pad_axis(lhs.astype(jnp.bfloat16), 0, TM), 1, TK)
    w_p = _pad_axis(_pad_axis(w2d.astype(jnp.bfloat16), 0, TK), 1, TN)
    s_p = _pad_axis(scale.reshape(1, -1).astype(jnp.float32), 1, TN)
    b_p = _pad_axis(bias.reshape(1, -1).astype(jnp.float32), 1, TN)

    mp, kp = lhs_p.shape
    npad = w_p.shape[1]
    grid = (mp // TM, npad // TN, kp // TK)

    in_specs = [
        pl.BlockSpec((TM, TK), lambda i, j, kk: (i, kk)),
        pl.BlockSpec((TK, TN), lambda i, j, kk: (kk, j)),
        pl.BlockSpec((1, TN), lambda i, j, kk: (0, j)),
        pl.BlockSpec((1, TN), lambda i, j, kk: (0, j)),
    ]
    args = [lhs_p, w_p, s_p, b_p]
    if residual is not None:
        r_p = _pad_axis(_pad_axis(residual.astype(jnp.float32), 0, TM), 1, TN)
        in_specs.append(pl.BlockSpec((TM, TN), lambda i, j, kk: (i, j)))
        args.append(r_p)
        kernel = functools.partial(_mm_bn_res_kernel, relu=relu)
    else:
        kernel = functools.partial(_mm_bn_kernel, relu=relu)

    bytes_accessed = (lhs_p.size * 2 + w_p.size * 2 + mp * npad * 4
                      + s_p.size * 4 + b_p.size * 4
                      + (0 if residual is None else mp * npad * 4))
    cost = pl.CostEstimate(flops=2 * mp * kp * npad, transcendentals=0,
                           bytes_accessed=int(bytes_accessed))

    out = pl.pallas_call(
        kernel,
        out_shape=jax.ShapeDtypeStruct((mp, npad), jnp.float32),
        grid_spec=pltpu.PrefetchScalarGridSpec(
            num_scalar_prefetch=0,
            grid=grid,
            in_specs=in_specs,
            out_specs=pl.BlockSpec((TM, TN), lambda i, j, kk: (i, j)),
            scratch_shapes=[pltpu.VMEM((TM, TN), jnp.float32)],
        ),
        compiler_params=pltpu.CompilerParams(
            dimension_semantics=("parallel", "parallel", "arbitrary"),
            vmem_limit_bytes=32 * 1024 * 1024,
        ),
        cost_estimate=cost,
    )(*args)
    return out[:m, :n]


# --------------------------------- conv glue --------------------------------

def _w_to_2d(w_oihw):
    cout, cin, kh, kw = w_oihw.shape
    return jnp.transpose(w_oihw, (2, 3, 1, 0)).reshape(kh * kw * cin, cout)


def _bn_fold(bn):
    scale = bn['gamma'] * lax.rsqrt(bn['var'] + BN_EPS)
    bias = bn['beta'] - bn['mean'] * scale
    return scale, bias


def conv1x1_bn(x, w_oihw, bn, stride=1, relu=True, residual=None):
    """1x1 conv (+optional spatial stride) + folded BN (+residual) (+ReLU). NHWC."""
    if stride > 1:
        x = x[:, ::stride, ::stride, :]
    n, h, w, cin = x.shape
    cout = w_oihw.shape[0]
    lhs = x.reshape(n * h * w, cin)
    res2d = None if residual is None else residual.reshape(n * h * w, cout)
    scale, bias = _bn_fold(bn)
    out = fused_matmul_bn(lhs, _w_to_2d(w_oihw), scale, bias, res2d, relu)
    return out.reshape(n, h, w, cout)


def conv3x3_bn(x, w_oihw, bn, stride=1, dilation=1, relu=True):
    """3x3 conv (padding=dilation) via bf16 im2col + fused tiled matmul. NHWC."""
    # TODO(synk): fold the 3x3 taps into the kernel (tap grid axis / index_map
    # offsets on the NHWC activation) to avoid the 9x im2col HBM staging for
    # large activations.
    n, h, w, cin = x.shape
    cout = w_oihw.shape[0]
    pad = dilation
    ho = (h + 2 * pad - dilation * 2 - 1) // stride + 1
    wo = (w + 2 * pad - dilation * 2 - 1) // stride + 1
    xp = jnp.pad(x.astype(jnp.bfloat16),
                 ((0, 0), (pad, pad), (pad, pad), (0, 0)))
    cols = []
    for i in range(3):
        for j in range(3):
            hi = i * dilation
            wj = j * dilation
            cols.append(xp[:, hi:hi + (ho - 1) * stride + 1:stride,
                           wj:wj + (wo - 1) * stride + 1:stride, :])
    patches = jnp.concatenate(cols, axis=-1).reshape(n * ho * wo, 9 * cin)
    scale, bias = _bn_fold(bn)
    out = fused_matmul_bn(patches, _w_to_2d(w_oihw), scale, bias, None, relu)
    return out.reshape(n, ho, wo, cout)


# -------------------------------- parameters --------------------------------

def init_bottleneck_params(key, inplanes, planes, stride=1, dilation=1):
    expansion = 4
    ks = jax.random.split(key, 8)

    def conv_w(k, cout, cin, kh, kw):
        return jax.random.normal(k, (cout, cin, kh, kw), jnp.float32) * 0.09

    def bn_params(k, c):
        k1, k2, k3, k4 = jax.random.split(k, 4)
        return dict(
            gamma=jax.random.uniform(k1, (c,), jnp.float32, 0.5, 1.5),
            beta=jax.random.normal(k2, (c,), jnp.float32) * 0.1,
            mean=jax.random.normal(k3, (c,), jnp.float32) * 0.1,
            var=jax.random.uniform(k4, (c,), jnp.float32, 0.5, 1.5),
        )

    params = {
        'stride': stride,
        'dilation': dilation,
        'conv1': conv_w(ks[0], planes, inplanes, 1, 1),
        'bn1': bn_params(ks[1], planes),
        'conv2': conv_w(ks[2], planes, planes, 3, 3),
        'bn2': bn_params(ks[3], planes),
        'conv3': conv_w(ks[4], planes * expansion, planes, 1, 1),
        'bn3': bn_params(ks[5], planes * expansion),
    }
    if stride != 1 or inplanes != planes * expansion:
        # Standard ResNet downsample: 1x1 strided conv + BatchNorm.
        params['down_conv'] = conv_w(ks[6], planes * expansion, inplanes, 1, 1)
        params['down_bn'] = bn_params(ks[7], planes * expansion)
    return params


# ---------------------------------- forward ---------------------------------

def bottleneck_forward(params, x_nchw):
    x = jnp.transpose(x_nchw, (0, 2, 3, 1)).astype(jnp.float32)   # NCHW -> NHWC
    s, d = params['stride'], params['dilation']

    out = conv1x1_bn(x, params['conv1'], params['bn1'], relu=True)          # conv1+bn1+relu
    out = conv3x3_bn(out, params['conv2'], params['bn2'],
                     stride=s, dilation=d, relu=True)                        # conv2+bn2+relu

    if 'down_conv' in params:
        identity = conv1x1_bn(x, params['down_conv'], params['down_bn'],
                              stride=s, relu=False)                          # downsample
    else:
        identity = x

    # conv3 + bn3 + residual add + ReLU fused into one Pallas call.
    out = conv1x1_bn(out, params['conv3'], params['bn3'],
                     relu=True, residual=identity)
    return jnp.transpose(out, (0, 3, 1, 2))                                  # NHWC -> NCHW


# ----------------------- pure-JAX reference (f32) ----------------------------

def _bn_apply(x, bn):
    scale, bias = _bn_fold(bn)
    return x * scale + bias


def bottleneck_reference(params, x_nchw):
    x = jnp.transpose(x_nchw, (0, 2, 3, 1)).astype(jnp.float32)
    s, d = params['stride'], params['dilation']

    def conv(inp, w, stride, dilation, pad):
        return lax.conv_general_dilated(
            inp, jnp.transpose(w, (2, 3, 1, 0)),            # OIHW -> HWIO
            window_strides=(stride, stride),
            padding=((pad, pad), (pad, pad)),
            rhs_dilation=(dilation, dilation),
            dimension_numbers=('NHWC', 'HWIO', 'NHWC'))

    out = jnp.maximum(_bn_apply(conv(x, params['conv1'], 1, 1, 0), params['bn1']), 0.0)
    out = jnp.maximum(_bn_apply(conv(out, params['conv2'], s, d, d), params['bn2']), 0.0)
    out = _bn_apply(conv(out, params['conv3'], 1, 1, 0), params['bn3'])
    if 'down_conv' in params:
        identity = _bn_apply(conv(x, params['down_conv'], s, 1, 0), params['down_bn'])
    else:
        identity = x
    out = jnp.maximum(out + identity, 0.0)
    return jnp.transpose(out, (0, 3, 1, 2))


# ------------------------------------ main -----------------------------------

if __name__ == "__main__":
    key = jax.random.PRNGKey(0)
    kp, kx = jax.random.split(key)

    # Bottleneck(inplanes=64, planes=32, stride=2) with downsample -> 128 out ch.
    N, INPLANES, H, W = 2, 64, 16, 16
    PLANES, STRIDE, DILATION = 32, 2, 1

    params = init_bottleneck_params(kp, INPLANES, PLANES, STRIDE, DILATION)
    x = jax.random.normal(kx, (N, INPLANES, H, W), jnp.float32)

    fwd = jax.jit(functools.partial(bottleneck_forward, params))
    out = jax.block_until_ready(fwd(x))

    assert out.shape == (N, PLANES * 4, H // STRIDE, W // STRIDE), out.shape
    assert bool(jnp.all(jnp.isfinite(out)))

    # Numerical sanity check vs a pure-JAX f32 reference (kernel uses bf16
    # MXU operands with f32 accumulation, so allow a small tolerance).
    ref = bottleneck_reference(params, x)
    tol = 0.05 * (1.0 + float(jnp.max(jnp.abs(ref))))
    max_err = float(jnp.max(jnp.abs(out - ref)))
    assert max_err < tol, (max_err, tol)

    print("KERNEL_OK")
</pallas_src>

<mosaic_0001>
module attributes {stable_mosaic.version = 11 : i64} {
  func.func @_mm_bn_kernel(%arg0: i32, %arg1: i32, %arg2: i32, %arg3: memref<128x128xbf16, #tpu.memory_space<vmem>>, %arg4: memref<128x128xbf16, #tpu.memory_space<vmem>>, %arg5: memref<1x128xf32, #tpu.memory_space<vmem>>, %arg6: memref<1x128xf32, #tpu.memory_space<vmem>>, %arg7: memref<128x128xf32, #tpu.memory_space<vmem>>, %arg8: memref<128x128xf32, #tpu.memory_space<vmem>>) attributes {dimension_semantics = [#tpu.dimension_semantics<parallel>, #tpu.dimension_semantics<parallel>, #tpu.dimension_semantics<arbitrary>], iteration_bounds = array<i64: 4, 1, 1>, scalar_prefetch = 0 : i64, scratch_operands = 1 : i64, tpu.core_type = #tpu.core_type<tc>, window_params = [{transform_indices = @transform_0, window_bounds = array<i64: 128, 128>}, {transform_indices = @transform_1, window_bounds = array<i64: 128, 128>}, {transform_indices = @transform_2, window_bounds = array<i64: 1, 128>}, {transform_indices = @transform_3, window_bounds = array<i64: 1, 128>}, {transform_indices = @transform_4, window_bounds = array<i64: 128, 128>}]} {
    %c0_i32 = arith.constant 0 : i32
    %0 = arith.cmpi eq, %arg2, %c0_i32 : i32
    %1 = arith.extui %0 : i1 to i32
    %c0_i32_0 = arith.constant 0 : i32
    %2 = arith.cmpi ne, %1, %c0_i32_0 : i32
    scf.if %2 {
      %cst_10 = arith.constant 0.000000e+00 : f32
      %12 = vector.broadcast %cst_10 : f32 to vector<128x128xf32>
      %c0_11 = arith.constant 0 : index
      %c0_12 = arith.constant 0 : index
      %13 = vector.load %arg8[%c0_11, %c0_12] : memref<128x128xf32, #tpu.memory_space<vmem>>, vector<128x128xf32>
      tpu.vector_store %arg8[%c0_11, %c0_12], %12 {strides = array<i32>} : memref<128x128xf32, #tpu.memory_space<vmem>>, vector<128x128xf32>,
    } else {
    }
    %c0 = arith.constant 0 : index
    %c0_1 = arith.constant 0 : index
    %3 = vector.load %arg8[%c0, %c0_1] : memref<128x128xf32, #tpu.memory_space<vmem>>, vector<128x128xf32>
    %c0_2 = arith.constant 0 : index
    %c0_3 = arith.constant 0 : index
    %4 = vector.load %arg3[%c0_2, %c0_3] : memref<128x128xbf16, #tpu.memory_space<vmem>>, vector<128x128xbf16>
    %c0_4 = arith.constant 0 : index
    %c0_5 = arith.constant 0 : index
    %5 = vector.load %arg4[%c0_4, %c0_5] : memref<128x128xbf16, #tpu.memory_space<vmem>>, vector<128x128xbf16>
    %cst = arith.constant dense<0.000000e+00> : vector<128x128xf32>
    %6 = tpu.matmul %4, %5, %cst {dimension_numbers = #tpu.dot_dimension_numbers<[1], [0], [0], [1], [0, 0, 1, 1], [], []>} : vector<128x128xbf16>, vector<128x128xbf16>, vector<128x128xf32> -> vector<128x128xf32>
    %7 = arith.addf %3, %6 : vector<128x128xf32>
    %c0_6 = arith.constant 0 : index
    %c0_7 = arith.constant 0 : index
    %8 = vector.load %arg8[%c0_6, %c0_7] : memref<128x128xf32, #tpu.memory_space<vmem>>, vector<128x128xf32>
    tpu.vector_store %arg8[%c0_6, %c0_7], %7 {strides = array<i32>} : memref<128x128xf32, #tpu.memory_space<vmem>>, vector<128x128xf32>,
    %c0_i32_8 = arith.constant 0 : i32
    %9 = arith.cmpi eq, %arg2, %c0_i32_8 : i32
    %10 = arith.extui %9 : i1 to i32
    %c0_i32_9 = arith.constant 0 : i32
    %11 = arith.cmpi ne, %10, %c0_i32_9 : i32
    scf.if %11 {
      %c0_10 = arith.constant 0 : index
      %c0_11 = arith.constant 0 : index
      %12 = vector.load %arg8[%c0_10, %c0_11] : memref<128x128xf32, #tpu.memory_space<vmem>>, vector<128x128xf32>
      %c0_12 = arith.constant 0 : index
      %c0_13 = arith.constant 0 : index
      %13 = vector.load %arg5[%c0_12, %c0_13] : memref<1x128xf32, #tpu.memory_space<vmem>>, vector<1x128xf32>
      %14 = vector.broadcast %13 : vector<1x128xf32> to vector<128x128xf32>
      %15 = arith.mulf %12, %14 : vector<128x128xf32>
      %c0_14 = arith.constant 0 : index
      %c0_15 = arith.constant 0 : index
      %16 = vector.load %arg6[%c0_14, %c0_15] : memref<1x128xf32, #tpu.memory_space<vmem>>, vector<1x128xf32>
      %17 = vector.broadcast %16 : vector<1x128xf32> to vector<128x128xf32>
      %18 = arith.addf %15, %17 : vector<128x128xf32>
      %cst_16 = arith.constant 0.000000e+00 : f32
      %19 = vector.broadcast %cst_16 : f32 to vector<128x128xf32>
      %20 = arith.maximumf %18, %19 : vector<128x128xf32>
      %c0_17 = arith.constant 0 : index
      %c0_18 = arith.constant 0 : index
      %21 = vector.load %arg7[%c0_17, %c0_18] : memref<128x128xf32, #tpu.memory_space<vmem>>, vector<128x128xf32>
      tpu.vector_store %arg7[%c0_17, %c0_18], %20 {strides = array<i32>} : memref<128x128xf32, #tpu.memory_space<vmem>>, vector<128x128xf32>,
    } else {
    }
    return
  }
  func.func @transform_0(%arg0: i32, %arg1: i32, %arg2: i32) -> (i32, i32) {
    %c0_i32 = arith.constant 0 : i32
    return %arg0, %arg2 : i32, i32
  }
  func.func @transform_1(%arg0: i32, %arg1: i32, %arg2: i32) -> (i32, i32) {
    %c0_i32 = arith.constant 0 : i32
    return %arg2, %arg1 : i32, i32
  }
  func.func @transform_2(%arg0: i32, %arg1: i32, %arg2: i32) -> (i32, i32) {
    %c0_i32 = arith.constant 0 : i32
    %c0_i32_0 = arith.constant 0 : i32
    return %c0_i32, %arg1 : i32, i32
  }
  func.func @transform_3(%arg0: i32, %arg1: i32, %arg2: i32) -> (i32, i32) {
    %c0_i32 = arith.constant 0 : i32
    %c0_i32_0 = arith.constant 0 : i32
    return %c0_i32, %arg1 : i32, i32
  }
  func.func @transform_4(%arg0: i32, %arg1: i32, %arg2: i32) -> (i32, i32) {
    %c0_i32 = arith.constant 0 : i32
    return %arg0, %arg1 : i32, i32
  }
}

module attributes {stable_mosaic.version = 11 : i64} {
  func.func @_mm_bn_kernel(%arg0: i32, %arg1: i32, %arg2: i32, %arg3: memref<128x128xbf16, #tpu.memory_space<vmem>>, %arg4: memref<128x128xbf16, #tpu.memory_space<vmem>>, %arg5: memref<1x128xf32, #tpu.memory_space<vmem>>, %arg6: memref<1x128xf32, #tpu.memory_space<vmem>>, %arg7: memref<128x128xf32, #tpu.memory_space<vmem>>, %arg8: memref<128x128xf32, #tpu.memory_space<vmem>>) attributes {dimension_semantics = [#tpu.dimension_semantics<parallel>, #tpu.dimension_semantics<parallel>, #tpu.dimension_semantics<arbitrary>], iteration_bounds = array<i64: 1, 1, 3>, scalar_prefetch = 0 : i64, scratch_operands = 1 : i64, tpu.core_type = #tpu.core_type<tc>, window_params = [{transform_indices = @transform_0, window_bounds = array<i64: 128, 128>}, {transform_indices = @transform_1, window_bounds = array<i64: 128, 128>}, {transform_indices = @transform_2, window_bounds = array<i64: 1, 128>}, {transform_indices = @transform_3, window_bounds = array<i64: 1, 128>}, {transform_indices = @transform_4, window_bounds = array<i64: 128, 128>}]} {
    %c0_i32 = arith.constant 0 : i32
    %0 = arith.cmpi eq, %arg2, %c0_i32 : i32
    %1 = arith.extui %0 : i1 to i32
    %c0_i32_0 = arith.constant 0 : i32
    %2 = arith.cmpi ne, %1, %c0_i32_0 : i32
    scf.if %2 {
      %cst_9 = arith.constant 0.000000e+00 : f32
      %12 = vector.broadcast %cst_9 : f32 to vector<128x128xf32>
      %c0_10 = arith.constant 0 : index
      %c0_11 = arith.constant 0 : index
      %13 = vector.load %arg8[%c0_10, %c0_11] : memref<128x128xf32, #tpu.memory_space<vmem>>, vector<128x128xf32>
      tpu.vector_store %arg8[%c0_10, %c0_11], %12 {strides = array<i32>} : memref<128x128xf32, #tpu.memory_space<vmem>>, vector<128x128xf32>,
    } else {
    }
    %c0 = arith.constant 0 : index
    %c0_1 = arith.constant 0 : index
    %3 = vector.load %arg8[%c0, %c0_1] : memref<128x128xf32, #tpu.memory_space<vmem>>, vector<128x128xf32>
    %c0_2 = arith.constant 0 : index
    %c0_3 = arith.constant 0 : index
    %4 = vector.load %arg3[%c0_2, %c0_3] : memref<128x128xbf16, #tpu.memory_space<vmem>>, vector<128x128xbf16>
    %c0_4 = arith.constant 0 : index
    %c0_5 = arith.constant 0 : index
    %5 = vector.load %arg4[%c0_4, %c0_5] : memref<128x128xbf16, #tpu.memory_space<vmem>>, vector<128x128xbf16>
    %cst = arith.constant dense<0.000000e+00> : vector<128x128xf32>
    %6 = tpu.matmul %4, %5, %cst {dimension_numbers = #tpu.dot_dimension_numbers<[1], [0], [0], [1], [0, 0, 1, 1], [], []>} : vector<128x128xbf16>, vector<128x128xbf16>, vector<128x128xf32> -> vector<128x128xf32>
    %7 = arith.addf %3, %6 : vector<128x128xf32>
    %c0_6 = arith.constant 0 : index
    %c0_7 = arith.constant 0 : index
    %8 = vector.load %arg8[%c0_6, %c0_7] : memref<128x128xf32, #tpu.memory_space<vmem>>, vector<128x128xf32>
    tpu.vector_store %arg8[%c0_6, %c0_7], %7 {strides = array<i32>} : memref<128x128xf32, #tpu.memory_space<vmem>>, vector<128x128xf32>,
    %c2_i32 = arith.constant 2 : i32
    %9 = arith.cmpi eq, %arg2, %c2_i32 : i32
    %10 = arith.extui %9 : i1 to i32
    %c0_i32_8 = arith.constant 0 : i32
    %11 = arith.cmpi ne, %10, %c0_i32_8 : i32
    scf.if %11 {
      %c0_9 = arith.constant 0 : index
      %c0_10 = arith.constant 0 : index
      %12 = vector.load %arg8[%c0_9, %c0_10] : memref<128x128xf32, #tpu.memory_space<vmem>>, vector<128x128xf32>
      %c0_11 = arith.constant 0 : index
      %c0_12 = arith.constant 0 : index
      %13 = vector.load %arg5[%c0_11, %c0_12] : memref<1x128xf32, #tpu.memory_space<vmem>>, vector<1x128xf32>
      %14 = vector.broadcast %13 : vector<1x128xf32> to vector<128x128xf32>
      %15 = arith.mulf %12, %14 : vector<128x128xf32>
      %c0_13 = arith.constant 0 : index
      %c0_14 = arith.constant 0 : index
      %16 = vector.load %arg6[%c0_13, %c0_14] : memref<1x128xf32, #tpu.memory_space<vmem>>, vector<1x128xf32>
      %17 = vector.broadcast %16 : vector<1x128xf32> to vector<128x128xf32>
      %18 = arith.addf %15, %17 : vector<128x128xf32>
      %cst_15 = arith.constant 0.000000e+00 : f32
      %19 = vector.broadcast %cst_15 : f32 to vector<128x128xf32>
      %20 = arith.maximumf %18, %19 : vector<128x128xf32>
      %c0_16 = arith.constant 0 : index
      %c0_17 = arith.constant 0 : index
      %21 = vector.load %arg7[%c0_16, %c0_17] : memref<128x128xf32, #tpu.memory_space<vmem>>, vector<128x128xf32>
      tpu.vector_store %arg7[%c0_16, %c0_17], %20 {strides = array<i32>} : memref<128x128xf32, #tpu.memory_space<vmem>>, vector<128x128xf32>,
    } else {
    }
    return
  }
  func.func @transform_0(%arg0: i32, %arg1: i32, %arg2: i32) -> (i32, i32) {
    %c0_i32 = arith.constant 0 : i32
    return %arg0, %arg2 : i32, i32
  }
  func.func @transform_1(%arg0: i32, %arg1: i32, %arg2: i32) -> (i32, i32) {
    %c0_i32 = arith.constant 0 : i32
    return %arg2, %arg1 : i32, i32
  }
  func.func @transform_2(%arg0: i32, %arg1: i32, %arg2: i32) -> (i32, i32) {
    %c0_i32 = arith.constant 0 : i32
    %c0_i32_0 = arith.constant 0 : i32
    return %c0_i32, %arg1 : i32, i32
  }
  func.func @transform_3(%arg0: i32, %arg1: i32, %arg2: i32) -> (i32, i32) {
    %c0_i32 = arith.constant 0 : i32
    %c0_i32_0 = arith.constant 0 : i32
    return %c0_i32, %arg1 : i32, i32
  }
  func.func @transform_4(%arg0: i32, %arg1: i32, %arg2: i32) -> (i32, i32) {
    %c0_i32 = arith.constant 0 : i32
    return %arg0, %arg1 : i32, i32
  }
}

module attributes {stable_mosaic.version = 11 : i64} {
  func.func @_mm_bn_res_kernel(%arg0: i32, %arg1: i32, %arg2: i32, %arg3: memref<128x128xbf16, #tpu.memory_space<vmem>>, %arg4: memref<128x128xbf16, #tpu.memory_space<vmem>>, %arg5: memref<1x128xf32, #tpu.memory_space<vmem>>, %arg6: memref<1x128xf32, #tpu.memory_space<vmem>>, %arg7: memref<128x128xf32, #tpu.memory_space<vmem>>, %arg8: memref<128x128xf32, #tpu.memory_space<vmem>>, %arg9: memref<128x128xf32, #tpu.memory_space<vmem>>) attributes {dimension_semantics = [#tpu.dimension_semantics<parallel>, #tpu.dimension_semantics<parallel>, #tpu.dimension_semantics<arbitrary>], iteration_bounds = array<i64: 1, 1, 1>, scalar_prefetch = 0 : i64, scratch_operands = 1 : i64, tpu.core_type = #tpu.core_type<tc>, window_params = [{transform_indices = @transform_0, window_bounds = array<i64: 128, 128>}, {transform_indices = @transform_1, window_bounds = array<i64: 128, 128>}, {transform_indices = @transform_2, window_bounds = array<i64: 1, 128>}, {transform_indices = @transform_3, window_bounds = array<i64: 1, 128>}, {transform_indices = @transform_4, window_bounds = array<i64: 128, 128>}, {transform_indices = @transform_5, window_bounds = array<i64: 128, 128>}]} {
    %c0_i32 = arith.constant 0 : i32
    %0 = arith.cmpi eq, %arg2, %c0_i32 : i32
    %1 = arith.extui %0 : i1 to i32
    %c0_i32_0 = arith.constant 0 : i32
    %2 = arith.cmpi ne, %1, %c0_i32_0 : i32
    scf.if %2 {
      %cst_10 = arith.constant 0.000000e+00 : f32
      %12 = vector.broadcast %cst_10 : f32 to vector<128x128xf32>
      %c0_11 = arith.constant 0 : index
      %c0_12 = arith.constant 0 : index
      %13 = vector.load %arg9[%c0_11, %c0_12] : memref<128x128xf32, #tpu.memory_space<vmem>>, vector<128x128xf32>
      tpu.vector_store %arg9[%c0_11, %c0_12], %12 {strides = array<i32>} : memref<128x128xf32, #tpu.memory_space<vmem>>, vector<128x128xf32>,
    } else {
    }
    %c0 = arith.constant 0 : index
    %c0_1 = arith.constant 0 : index
    %3 = vector.load %arg9[%c0, %c0_1] : memref<128x128xf32, #tpu.memory_space<vmem>>, vector<128x128xf32>
    %c0_2 = arith.constant 0 : index
    %c0_3 = arith.constant 0 : index
    %4 = vector.load %arg3[%c0_2, %c0_3] : memref<128x128xbf16, #tpu.memory_space<vmem>>, vector<128x128xbf16>
    %c0_4 = arith.constant 0 : index
    %c0_5 = arith.constant 0 : index
    %5 = vector.load %arg4[%c0_4, %c0_5] : memref<128x128xbf16, #tpu.memory_space<vmem>>, vector<128x128xbf16>
    %cst = arith.constant dense<0.000000e+00> : vector<128x128xf32>
    %6 = tpu.matmul %4, %5, %cst {dimension_numbers = #tpu.dot_dimension_numbers<[1], [0], [0], [1], [0, 0, 1, 1], [], []>} : vector<128x128xbf16>, vector<128x128xbf16>, vector<128x128xf32> -> vector<128x128xf32>
    %7 = arith.addf %3, %6 : vector<128x128xf32>
    %c0_6 = arith.constant 0 : index
    %c0_7 = arith.constant 0 : index
    %8 = vector.load %arg9[%c0_6, %c0_7] : memref<128x128xf32, #tpu.memory_space<vmem>>, vector<128x128xf32>
    tpu.vector_store %arg9[%c0_6, %c0_7], %7 {strides = array<i32>} : memref<128x128xf32, #tpu.memory_space<vmem>>, vector<128x128xf32>,
    %c0_i32_8 = arith.constant 0 : i32
    %9 = arith.cmpi eq, %arg2, %c0_i32_8 : i32
    %10 = arith.extui %9 : i1 to i32
    %c0_i32_9 = arith.constant 0 : i32
    %11 = arith.cmpi ne, %10, %c0_i32_9 : i32
    scf.if %11 {
      %c0_10 = arith.constant 0 : index
      %c0_11 = arith.constant 0 : index
      %12 = vector.load %arg9[%c0_10, %c0_11] : memref<128x128xf32, #tpu.memory_space<vmem>>, vector<128x128xf32>
      %c0_12 = arith.constant 0 : index
      %c0_13 = arith.constant 0 : index
      %13 = vector.load %arg5[%c0_12, %c0_13] : memref<1x128xf32, #tpu.memory_space<vmem>>, vector<1x128xf32>
      %14 = vector.broadcast %13 : vector<1x128xf32> to vector<128x128xf32>
      %15 = arith.mulf %12, %14 : vector<128x128xf32>
      %c0_14 = arith.constant 0 : index
      %c0_15 = arith.constant 0 : index
      %16 = vector.load %arg6[%c0_14, %c0_15] : memref<1x128xf32, #tpu.memory_space<vmem>>, vector<1x128xf32>
      %17 = vector.broadcast %16 : vector<1x128xf32> to vector<128x128xf32>
      %18 = arith.addf %15, %17 : vector<128x128xf32>
      %c0_16 = arith.constant 0 : index
      %c0_17 = arith.constant 0 : index
      %19 = vector.load %arg7[%c0_16, %c0_17] : memref<128x128xf32, #tpu.memory_space<vmem>>, vector<128x128xf32>
      %20 = arith.addf %18, %19 : vector<128x128xf32>
      %cst_18 = arith.constant 0.000000e+00 : f32
      %21 = vector.broadcast %cst_18 : f32 to vector<128x128xf32>
      %22 = arith.maximumf %20, %21 : vector<128x128xf32>
      %c0_19 = arith.constant 0 : index
      %c0_20 = arith.constant 0 : index
      %23 = vector.load %arg8[%c0_19, %c0_20] : memref<128x128xf32, #tpu.memory_space<vmem>>, vector<128x128xf32>
      tpu.vector_store %arg8[%c0_19, %c0_20], %22 {strides = array<i32>} : memref<128x128xf32, #tpu.memory_space<vmem>>, vector<128x128xf32>,
    } else {
    }
    return
  }
  func.func @transform_0(%arg0: i32, %arg1: i32, %arg2: i32) -> (i32, i32) {
    %c0_i32 = arith.constant 0 : i32
    return %arg0, %arg2 : i32, i32
  }
  func.func @transform_1(%arg0: i32, %arg1: i32, %arg2: i32) -> (i32, i32) {
    %c0_i32 = arith.constant 0 : i32
    return %arg2, %arg1 : i32, i32
  }
  func.func @transform_2(%arg0: i32, %arg1: i32, %arg2: i32) -> (i32, i32) {
    %c0_i32 = arith.constant 0 : i32
    %c0_i32_0 = arith.constant 0 : i32
    return %c0_i32, %arg1 : i32, i32
  }
  func.func @transform_3(%arg0: i32, %arg1: i32, %arg2: i32) -> (i32, i32) {
    %c0_i32 = arith.constant 0 : i32
    %c0_i32_0 = arith.constant 0 : i32
    return %c0_i32, %arg1 : i32, i32
  }
  func.func @transform_4(%arg0: i32, %arg1: i32, %arg2: i32) -> (i32, i32) {
    %c0_i32 = arith.constant 0 : i32
    return %arg0, %arg1 : i32, i32
  }
  func.func @transform_5(%arg0: i32, %arg1: i32, %arg2: i32) -> (i32, i32) {
    %c0_i32 = arith.constant 0 : i32
    return %arg0, %arg1 : i32, i32
  }
}

module attributes {stable_mosaic.version = 11 : i64} {
  func.func @_mm_bn_kernel(%arg0: i32, %arg1: i32, %arg2: i32, %arg3: memref<128x128xbf16, #tpu.memory_space<vmem>>, %arg4: memref<128x128xbf16, #tpu.memory_space<vmem>>, %arg5: memref<1x128xf32, #tpu.memory_space<vmem>>, %arg6: memref<1x128xf32, #tpu.memory_space<vmem>>, %arg7: memref<128x128xf32, #tpu.memory_space<vmem>>, %arg8: memref<128x128xf32, #tpu.memory_space<vmem>>) attributes {dimension_semantics = [#tpu.dimension_semantics<parallel>, #tpu.dimension_semantics<parallel>, #tpu.dimension_semantics<arbitrary>], iteration_bounds = array<i64: 1, 1, 1>, scalar_prefetch = 0 : i64, scratch_operands = 1 : i64, tpu.core_type = #tpu.core_type<tc>, window_params = [{transform_indices = @transform_0, window_bounds = array<i64: 128, 128>}, {transform_indices = @transform_1, window_bounds = array<i64: 128, 128>}, {transform_indices = @transform_2, window_bounds = array<i64: 1, 128>}, {transform_indices = @transform_3, window_bounds = array<i64: 1, 128>}, {transform_indices = @transform_4, window_bounds = array<i64: 128, 128>}]} {
    %c0_i32 = arith.constant 0 : i32
    %0 = arith.cmpi eq, %arg2, %c0_i32 : i32
    %1 = arith.extui %0 : i1 to i32
    %c0_i32_0 = arith.constant 0 : i32
    %2 = arith.cmpi ne, %1, %c0_i32_0 : i32
    scf.if %2 {
      %cst_10 = arith.constant 0.000000e+00 : f32
      %12 = vector.broadcast %cst_10 : f32 to vector<128x128xf32>
      %c0_11 = arith.constant 0 : index
      %c0_12 = arith.constant 0 : index
      %13 = vector.load %arg8[%c0_11, %c0_12] : memref<128x128xf32, #tpu.memory_space<vmem>>, vector<128x128xf32>
      tpu.vector_store %arg8[%c0_11, %c0_12], %12 {strides = array<i32>} : memref<128x128xf32, #tpu.memory_space<vmem>>, vector<128x128xf32>,
    } else {
    }
    %c0 = arith.constant 0 : index
    %c0_1 = arith.constant 0 : index
    %3 = vector.load %arg8[%c0, %c0_1] : memref<128x128xf32, #tpu.memory_space<vmem>>, vector<128x128xf32>
    %c0_2 = arith.constant 0 : index
    %c0_3 = arith.constant 0 : index
    %4 = vector.load %arg3[%c0_2, %c0_3] : memref<128x128xbf16, #tpu.memory_space<vmem>>, vector<128x128xbf16>
    %c0_4 = arith.constant 0 : index
    %c0_5 = arith.constant 0 : index
    %5 = vector.load %arg4[%c0_4, %c0_5] : memref<128x128xbf16, #tpu.memory_space<vmem>>, vector<128x128xbf16>
    %cst = arith.constant dense<0.000000e+00> : vector<128x128xf32>
    %6 = tpu.matmul %4, %5, %cst {dimension_numbers = #tpu.dot_dimension_numbers<[1], [0], [0], [1], [0, 0, 1, 1], [], []>} : vector<128x128xbf16>, vector<128x128xbf16>, vector<128x128xf32> -> vector<128x128xf32>
    %7 = arith.addf %3, %6 : vector<128x128xf32>
    %c0_6 = arith.constant 0 : index
    %c0_7 = arith.constant 0 : index
    %8 = vector.load %arg8[%c0_6, %c0_7] : memref<128x128xf32, #tpu.memory_space<vmem>>, vector<128x128xf32>
    tpu.vector_store %arg8[%c0_6, %c0_7], %7 {strides = array<i32>} : memref<128x128xf32, #tpu.memory_space<vmem>>, vector<128x128xf32>,
    %c0_i32_8 = arith.constant 0 : i32
    %9 = arith.cmpi eq, %arg2, %c0_i32_8 : i32
    %10 = arith.extui %9 : i1 to i32
    %c0_i32_9 = arith.constant 0 : i32
    %11 = arith.cmpi ne, %10, %c0_i32_9 : i32
    scf.if %11 {
      %c0_10 = arith.constant 0 : index
      %c0_11 = arith.constant 0 : index
      %12 = vector.load %arg8[%c0_10, %c0_11] : memref<128x128xf32, #tpu.memory_space<vmem>>, vector<128x128xf32>
      %c0_12 = arith.constant 0 : index
      %c0_13 = arith.constant 0 : index
      %13 = vector.load %arg5[%c0_12, %c0_13] : memref<1x128xf32, #tpu.memory_space<vmem>>, vector<1x128xf32>
      %14 = vector.broadcast %13 : vector<1x128xf32> to vector<128x128xf32>
      %15 = arith.mulf %12, %14 : vector<128x128xf32>
      %c0_14 = arith.constant 0 : index
      %c0_15 = arith.constant 0 : index
      %16 = vector.load %arg6[%c0_14, %c0_15] : memref<1x128xf32, #tpu.memory_space<vmem>>, vector<1x128xf32>
      %17 = vector.broadcast %16 : vector<1x128xf32> to vector<128x128xf32>
      %18 = arith.addf %15, %17 : vector<128x128xf32>
      %c0_16 = arith.constant 0 : index
      %c0_17 = arith.constant 0 : index
      %19 = vector.load %arg7[%c0_16, %c0_17] : memref<128x128xf32, #tpu.memory_space<vmem>>, vector<128x128xf32>
      tpu.vector_store %arg7[%c0_16, %c0_17], %18 {strides = array<i32>} : memref<128x128xf32, #tpu.memory_space<vmem>>, vector<128x128xf32>,
    } else {
    }
    return
  }
  func.func @transform_0(%arg0: i32, %arg1: i32, %arg2: i32) -> (i32, i32) {
    %c0_i32 = arith.constant 0 : i32
    return %arg0, %arg2 : i32, i32
  }
  func.func @transform_1(%arg0: i32, %arg1: i32, %arg2: i32) -> (i32, i32) {
    %c0_i32 = arith.constant 0 : i32
    return %arg2, %arg1 : i32, i32
  }
  func.func @transform_2(%arg0: i32, %arg1: i32, %arg2: i32) -> (i32, i32) {
    %c0_i32 = arith.constant 0 : i32
    %c0_i32_0 = arith.constant 0 : i32
    return %c0_i32, %arg1 : i32, i32
  }
  func.func @transform_3(%arg0: i32, %arg1: i32, %arg2: i32) -> (i32, i32) {
    %c0_i32 = arith.constant 0 : i32
    %c0_i32_0 = arith.constant 0 : i32
    return %c0_i32, %arg1 : i32, i32
  }
  func.func @transform_4(%arg0: i32, %arg1: i32, %arg2: i32) -> (i32, i32) {
    %c0_i32 = arith.constant 0 : i32
    return %arg0, %arg1 : i32, i32
  }
}

</mosaic_0001>

<llo_original>
// kernel: bottleneck_forward.4
$region0: #{bottleneck_forward.4}
  #allocation0 [shape = 'u32[]', space=smem, size = 0x4, offset = 0x4, fixed_abs, tag = 'smem constant byte address 0x4 - core index']
  #allocation1 [shape = 'u32[144,128]{1,0:T(1,128)}', space=vmem, size = 0x12000, scoped, tag = 'internal scratch']
  #allocation2 [shape = 'f32[128,128]{1,0:T(8,128)}', space=vmem, size = 0x10000, scoped, tag = 'scratch operand']
  %s0 = inlined_call_operand.vmem [shape: bf16[512,128], index: 0, kind: input, shape index: {}]
  %s1 = inlined_call_operand.vmem [shape: bf16[128,128], index: 1, kind: input, shape index: {}]
  %s2 = inlined_call_operand.vmem [shape: f32[1,128], index: 2, kind: input, shape index: {}]
  %s3 = inlined_call_operand.vmem [shape: f32[1,128], index: 3, kind: input, shape index: {}]
  %s4 = inlined_call_operand.vmem [shape: f32[512,128], index: 4, kind: output, shape index: {}]
  %s5 = sld [smem:[#allocation0]]
  $region57: #{bottleneck_forward.4} parent=0
    _
  %s7 = ssub.s32 1, %s5
  %s8 = scalar_select 0, %s7, %s5
  loop: start=0, step=1, limit=6
  $region2: #{bottleneck_forward.4} parent=0 // loop_pre_header
    _
  $region3: #{bottleneck_forward.4} parent=0 // loop_header
    %s10 = sphi 0, %s14
    %p11 = scmp.ge.s32.totalorder %s10, 6
    %s17 = sphi 0, %s36
    %s18 = sphi 0, %s32
    %s19 = sphi 0, %s28
    %s20 = sphi 0, %s17
    %s21 = sphi 0, %s18
    %s22 = sphi 0, %s19
    %s23 = sphi 0, %s20
    %s24 = sphi 0, %s21
    %s25 = sphi 0, %s22
    %s41 = sphi 0, %s43
    %s44 = sphi 0, %s41
    %s45 = sphi 0, %s44
    %s61 = sphi 0, %s45
    %s69 = sphi 0, %s71
    %s72 = sphi 0, %s69
    %s73 = sphi 0, %s72
    %s89 = sphi 0, %s73
    %s95 = sphi 0, %s97
    %s98 = sphi 0, %s95
    %s99 = sphi 0, %s98
    %s115 = sphi 0, %s99
    %s121 = sphi 0, %s123
    %s124 = sphi 0, %s121
    %s125 = sphi 0, %s124
    %s141 = sphi 0, %s125
    %s149 = sphi 0, %s151
    %s152 = sphi 0, %s149
    %s153 = sphi 0, %s152
    %s169 = sphi 0, %s153
  $region4: #{bottleneck_forward.4} parent=0 // loop_header_branch
    %13 = sbr.rel (%p11) target = $region8
  $region5: #{bottleneck_forward.4} parent=0 // loop_body
    %s15 = ssub.s32 %s10, 1
    %s16 = ssub.s32 %s10, 2
    %s26 = sadd.s32 1, %s19
    %p27 = scmp.ge.s32.totalorder %s26, 1
    %s28 = scalar_select %p27, 0, %s26
    %s29 = sadd.s32 1, %s18
    %s30 = scalar_select %p27, %s29, %s18
    %p31 = scmp.ge.s32.totalorder %s30, 1
    %s32 = scalar_select %p31, 0, %s30
    %s33 = sadd.s32 1, %s17
    %s34 = scalar_select %p31, %s33, %s17
    %p35 = scmp.ge.s32.totalorder %s34, 4
    %s36 = scalar_select %p35, 0, %s34
    %s37 = ssub.s32 %s17, %s36
    %s38 = ssub.s32 %s19, %s28
    %s39 = sor.u32 %s37, %s38
    %p40 = scmp.eq.s32.totalorder %s39, 0
    %s42 = sadd.s32 %s41, 1
    %s43 = scalar_select %p40, %s41, %s42
    %p46 = pneg %p40
    %p47 = scmp.eq.s32.totalorder %s10, 3
    %p48 = por %p46, %p47
    %p49 = scmp.ne.s32.totalorder %s41, %s44
    %p50 = scmp.eq.s32.totalorder %s10, 0
    %p51 = por %p49, %p50
    %p52 = scmp.ne.s32.totalorder %s41, %s44
    %p53 = scmp.eq.s32.totalorder %s15, 3
    %p54 = por %p52, %p53
    %p55 = scmp.ne.s32.totalorder %s44, %s45
    %p56 = scmp.eq.s32.totalorder %s15, 0
    %p57 = por %p55, %p56
    %p58 = scmp.ne.s32.totalorder %s44, %s45
    %p59 = scmp.eq.s32.totalorder %s16, 3
    %p60 = por %p58, %p59
    %p62 = scmp.ne.s32.totalorder %s45, %s61
    %p63 = scmp.eq.s32.totalorder %s16, 0
    %p64 = por %p62, %p63
    %s65 = ssub.s32 %s19, %s28
    %s66 = ssub.s32 %s18, %s32
    %s67 = sor.u32 %s65, %s66
    %p68 = scmp.eq.s32.totalorder %s67, 0
    %s70 = sadd.s32 %s69, 1
    %s71 = scalar_select %p68, %s69, %s70
    %p74 = pneg %p68
    %p75 = scmp.eq.s32.totalorder %s10, 3
    %p76 = por %p74, %p75
    %p77 = scmp.ne.s32.totalorder %s69, %s72
    %p78 = scmp.eq.s32.totalorder %s10, 0
    %p79 = por %p77, %p78
    %p80 = scmp.ne.s32.totalorder %s69, %s72
    %p81 = scmp.eq.s32.totalorder %s15, 3
    %p82 = por %p80, %p81
    %p83 = scmp.ne.s32.totalorder %s72, %s73
    %p84 = scmp.eq.s32.totalorder %s15, 0
    %p85 = por %p83, %p84
    %p86 = scmp.ne.s32.totalorder %s72, %s73
    %p87 = scmp.eq.s32.totalorder %s16, 3
    %p88 = por %p86, %p87
    %p90 = scmp.ne.s32.totalorder %s73, %s89
    %p91 = scmp.eq.s32.totalorder %s16, 0
    %p92 = por %p90, %p91
    %s93 = ssub.s32 %s18, %s32
    %p94 = scmp.eq.s32.totalorder %s93, 0
    %s96 = sadd.s32 %s95, 1
    %s97 = scalar_select %p94, %s95, %s96
    %p100 = pneg %p94
    %p101 = scmp.eq.s32.totalorder %s10, 3
    %p102 = por %p100, %p101
    %p103 = scmp.ne.s32.totalorder %s95, %s98
    %p104 = scmp.eq.s32.totalorder %s10, 0
    %p105 = por %p103, %p104
    %p106 = scmp.ne.s32.totalorder %s95, %s98
    %p107 = scmp.eq.s32.totalorder %s15, 3
    %p108 = por %p106, %p107
    %p109 = scmp.ne.s32.totalorder %s98, %s99
    %p110 = scmp.eq.s32.totalorder %s15, 0
    %p111 = por %p109, %p110
    %p112 = scmp.ne.s32.totalorder %s98, %s99
    %p113 = scmp.eq.s32.totalorder %s16, 3
    %p114 = por %p112, %p113
    %p116 = scmp.ne.s32.totalorder %s99, %s115
    %p117 = scmp.eq.s32.totalorder %s16, 0
    %p118 = por %p116, %p117
    %s119 = ssub.s32 %s18, %s32
    %p120 = scmp.eq.s32.totalorder %s119, 0
    %s122 = sadd.s32 %s121, 1
    %s123 = scalar_select %p120, %s121, %s122
    %p126 = pneg %p120
    %p127 = scmp.eq.s32.totalorder %s10, 3
    %p128 = por %p126, %p127
    %p129 = scmp.ne.s32.totalorder %s121, %s124
    %p130 = scmp.eq.s32.totalorder %s10, 0
    %p131 = por %p129, %p130
    %p132 = scmp.ne.s32.totalorder %s121, %s124
    %p133 = scmp.eq.s32.totalorder %s15, 3
    %p134 = por %p132, %p133
    %p135 = scmp.ne.s32.totalorder %s124, %s125
    %p136 = scmp.eq.s32.totalorder %s15, 0
    %p137 = por %p135, %p136
    %p138 = scmp.ne.s32.totalorder %s124, %s125
    %p139 = scmp.eq.s32.totalorder %s16, 3
    %p140 = por %p138, %p139
    %p142 = scmp.ne.s32.totalorder %s125, %s141
    %p143 = scmp.eq.s32.totalorder %s16, 0
    %p144 = por %p142, %p143
    %s145 = ssub.s32 %s17, %s36
    %s146 = ssub.s32 %s18, %s32
    %s147 = sor.u32 %s145, %s146
    %p148 = scmp.eq.s32.totalorder %s147, 0
    %s150 = sadd.s32 %s149, 1
    %s151 = scalar_select %p148, %s149, %s150
    %p154 = pneg %p148
    %p155 = scmp.eq.s32.totalorder %s10, 3
    %p156 = por %p154, %p155
    %p157 = scmp.ne.s32.totalorder %s149, %s152
    %p158 = scmp.eq.s32.totalorder %s10, 0
    %p159 = por %p157, %p158
    %p160 = scmp.ne.s32.totalorder %s149, %s152
    %p161 = scmp.eq.s32.totalorder %s15, 3
    %p162 = por %p160, %p161
    %p163 = scmp.ne.s32.totalorder %s152, %s153
    %p164 = scmp.eq.s32.totalorder %s15, 0
    %p165 = por %p163, %p164
    %p166 = scmp.ne.s32.totalorder %s152, %s153
    %p167 = scmp.eq.s32.totalorder %s16, 3
    %p168 = por %p166, %p167
    %p170 = scmp.ne.s32.totalorder %s153, %s169
    %p171 = scmp.eq.s32.totalorder %s16, 0
    %p172 = por %p170, %p171
    %p173 = scmp.le.s32.totalorder 1, %s10
    %p174 = scmp.lt.s32.totalorder %s10, 5
    %p175 = pnand %p173, %p174
    %p176 = pneg %p175
    // Predicated region
    $region9: #{bottleneck_forward.4} parent=5 // pred_check
      _
    $region10: #{bottleneck_forward.4} parent=5 // pred_check_branch
      %178 = sbr.rel (%p175) target = $region12
    $region11: #{bottleneck_forward.4} parent=5 // pred_region
      %s179 = ssub.s32 %s10, 1
      // Predicated region
      $region13: #{bottleneck_forward.4} parent=11 // pred_check
        %p180 = pneg %p85
      $region14: #{bottleneck_forward.4} parent=11 // pred_check_branch
        %182 = sbr.rel (%p180) target = $region16
      $region15: #{bottleneck_forward.4} parent=11 // pred_region
        %s183 = smul.u32 16, %s22
        %p184 = scmp.lt.s32.totalorder %s183, 15
        %s185 = scalar_select %p184, %s183, 15
        %p186 = scmp.lt.s32.totalorder %s21, 0
        %s187 = scalar_select %p186, %s21, 0
        %s188 = sadd.s32 %s187, %s185
        %s189 = smul.addr %s188, 4
        %s190 = scalar_lea.vmem %s1, %s189
        %s191 = smul.u32 16, %s22
      $region16: #{bottleneck_forward.4} parent=11 // pred_fallthru
        _
      // Predicated region
      $region17: #{bottleneck_forward.4} parent=11 // pred_check
        %p192 = pneg %p111
      $region18: #{bottleneck_forward.4} parent=11 // pred_check_branch
        %194 = sbr.rel (%p192) target = $region20
      $region19: #{bottleneck_forward.4} parent=11 // pred_region
        %p195 = scmp.lt.s32.totalorder %s21, 0
        %s196 = scalar_select %p195, %s21, 0
        %s197 = scalar_lea.vmem %s2, %s196
      $region20: #{bottleneck_forward.4} parent=11 // pred_fallthru
        _
      // Predicated region
      $region21: #{bottleneck_forward.4} parent=11 // pred_check
        %p198 = pneg %p137
      $region22: #{bottleneck_forward.4} parent=11 // pred_check_branch
        %200 = sbr.rel (%p198) target = $region24
      $region23: #{bottleneck_forward.4} parent=11 // pred_region
        %p201 = scmp.lt.s32.totalorder %s21, 0
        %s202 = scalar_select %p201, %s21, 0
        %s203 = scalar_lea.vmem %s3, %s202
      $region24: #{bottleneck_forward.4} parent=11 // pred_fallthru
        _
    $region12: #{bottleneck_forward.4} parent=5 // pred_fallthru
      _
    %p204 = scmp.lt.s32.totalorder %s10, 4
    // Predicated region
    $region25: #{bottleneck_forward.4} parent=5 // pred_check
      %p205 = pneg %p204
    $region26: #{bottleneck_forward.4} parent=5 // pred_check_branch
      %207 = sbr.rel (%p205) target = $region28
    $region27: #{bottleneck_forward.4} parent=5 // pred_region
      // Predicated region
      $region29: #{bottleneck_forward.4} parent=27 // pred_check
        %p208 = pneg %p51
      $region30: #{bottleneck_forward.4} parent=27 // pred_check_branch
        %210 = sbr.rel (%p208) target = $region32
      $region31: #{bottleneck_forward.4} parent=27 // pred_region
        %s211 = smul.u32 16, %s17
        %p212 = scmp.lt.s32.totalorder %s211, 63
        %s213 = scalar_select %p212, %s211, 63
        %p214 = scmp.lt.s32.totalorder %s19, 0
        %s215 = scalar_select %p214, %s19, 0
        %s216 = sadd.s32 %s215, %s213
        %s217 = smul.addr %s216, 4
        %s218 = scalar_lea.vmem %s0, %s217
        %s219 = smul.u32 16, %s17
      $region32: #{bottleneck_forward.4} parent=27 // pred_fallthru
        _
    $region28: #{bottleneck_forward.4} parent=5 // pred_fallthru
      _
    %p220 = scmp.le.s32.totalorder 1, %s10
    %p221 = scmp.lt.s32.totalorder %s10, 5
    %p222 = pnand %p220, %p221
    %p223 = pneg %p222
    // Predicated region
    $region33: #{bottleneck_forward.4} parent=5 // pred_check
      _
    $region34: #{bottleneck_forward.4} parent=5 // pred_check_branch
      %225 = sbr.rel (%p222) target = $region36
    $region35: #{bottleneck_forward.4} parent=5 // pred_region
      %s226 = ssub.s32 %s10, 1
      %s227 = smul.u32 16, %s20
      %p228 = scmp.lt.s32.totalorder %s227, 63
      %s229 = scalar_select %p228, %s227, 63
      %p230 = scmp.lt.s32.totalorder %s22, 0
      %s231 = scalar_select %p230, %s22, 0
      %s232 = sadd.s32 %s231, %s229
      %s233 = smul.addr %s232, 4
      %s234 = scalar_lea.vmem %s0, %s233
      %p235 = pneg %p57
      %p236 = pneg %p54
      %s237 = smul.u32 16, %s22
      %p238 = scmp.lt.s32.totalorder %s237, 15
      %s239 = scalar_select %p238, %s237, 15
      %p240 = scmp.lt.s32.totalorder %s21, 0
      %s241 = scalar_select %p240, %s21, 0
      %s242 = sadd.s32 %s241, %s239
      %s243 = smul.addr %s242, 4
      %s244 = scalar_lea.vmem %s1, %s243
      %p245 = pneg %p85
      %p246 = pneg %p82
      %p247 = scmp.lt.s32.totalorder %s21, 0
      %s248 = scalar_select %p247, %s21, 0
      %s249 = scalar_lea.vmem %s2, %s248
      %p250 = pneg %p111
      %p251 = pneg %p108
      %p252 = scmp.lt.s32.totalorder %s21, 0
      %s253 = scalar_select %p252, %s21, 0
      %s254 = scalar_lea.vmem %s3, %s253
      %p255 = pneg %p137
      %p256 = pneg %p134
      %p257 = pneg %p165
      %p258 = pneg %p162
      %s259 = smul.u32 16, %s20
      %p260 = scmp.lt.s32.totalorder %s259, 63
      %s261 = scalar_select %p260, %s259, 63
      %p262 = scmp.lt.s32.totalorder %s21, 0
      %s263 = scalar_select %p262, %s21, 0
      %s264 = sadd.s32 %s263, %s261
      %s265 = smul.addr %s264, 8
      %s266 = scalar_lea.vmem %s4, %s265
      %s267 = smul.u32 16, %s20
      %p268 = scmp.lt.s32.totalorder %s267, 63
      %s269 = scalar_select %p268, %s267, 63
      %p270 = scmp.lt.s32.totalorder %s22, 0
      %s271 = scalar_select %p270, %s22, 0
      %s272 = sadd.s32 %s271, %s269
      %s273 = smul.addr %s272, 4
      %s274 = scalar_lea.vmem %s0, %s273
      %s275 = smul.u32 16, %s20
      %s276 = smul.u32 16, %s22
      %p277 = scmp.lt.s32.totalorder %s276, 15
      %s278 = scalar_select %p277, %s276, 15
      %p279 = scmp.lt.s32.totalorder %s21, 0
      %s280 = scalar_select %p279, %s21, 0
      %s281 = sadd.s32 %s280, %s278
      %s282 = smul.addr %s281, 4
      %s283 = scalar_lea.vmem %s1, %s282
      %s284 = smul.u32 16, %s22
      %p285 = scmp.lt.s32.totalorder %s21, 0
      %s286 = scalar_select %p285, %s21, 0
      %s287 = scalar_lea.vmem %s2, %s286
      %p288 = scmp.lt.s32.totalorder %s21, 0
      %s289 = scalar_select %p288, %s21, 0
      %s290 = scalar_lea.vmem %s3, %s289
      %s291 = smul.u32 16, %s20
      %p292 = scmp.lt.s32.totalorder %s291, 63
      %s293 = scalar_select %p292, %s291, 63
      %p294 = scmp.lt.s32.totalorder %s21, 0
      %s295 = scalar_select %p294, %s21, 0
      %s296 = sadd.s32 %s295, %s293
      %s297 = smul.addr %s296, 8
      %s298 = scalar_lea.vmem %s4, %s297
      %s299 = smul.u32 16, %s20
      %p301 = scmp.eq.s32.totalorder %s22, 0
      // Predicated region
      $region37: #{bottleneck_forward.4} parent=35 // pred_check
        %p302 = pneg %p301
      $region38: #{bottleneck_forward.4} parent=35 // pred_check_branch
        %304 = sbr.rel (%p302) target = $region40
      $region39: #{bottleneck_forward.4} parent=35 // pred_region
        %305 = vst [vmem:[#allocation2] sm:$0xff] 0.0
        %306 = vst [vmem:[#allocation2 + $0x8] sm:$0xff] 0.0
        %307 = vst [vmem:[#allocation2 + $0x10] sm:$0xff] 0.0
        %308 = vst [vmem:[#allocation2 + $0x18] sm:$0xff] 0.0
        %309 = vst [vmem:[#allocation2 + $0x20] sm:$0xff] 0.0
        %310 = vst [vmem:[#allocation2 + $0x28] sm:$0xff] 0.0
        %311 = vst [vmem:[#allocation2 + $0x30] sm:$0xff] 0.0
        %312 = vst [vmem:[#allocation2 + $0x38] sm:$0xff] 0.0
        %313 = vst [vmem:[#allocation2 + $0x40] sm:$0xff] 0.0
        %314 = vst [vmem:[#allocation2 + $0x48] sm:$0xff] 0.0
        %315 = vst [vmem:[#allocation2 + $0x50] sm:$0xff] 0.0
        %316 = vst [vmem:[#allocation2 + $0x58] sm:$0xff] 0.0
        %317 = vst [vmem:[#allocation2 + $0x60] sm:$0xff] 0.0
        %318 = vst [vmem:[#allocation2 + $0x68] sm:$0xff] 0.0
        %319 = vst [vmem:[#allocation2 + $0x70] sm:$0xff] 0.0
        %320 = vst [vmem:[#allocation2 + $0x78] sm:$0xff] 0.0
      $region40: #{bottleneck_forward.4} parent=35 // pred_fallthru
        _
      %v321 = vld [vmem:[#allocation2] sm:$0xff]
      %v322 = vld [vmem:[#allocation2 + $0x8] sm:$0xff]
      %v323 = vld [vmem:[#allocation2 + $0x10] sm:$0xff]
      %v324 = vld [vmem:[#allocation2 + $0x18] sm:$0xff]
      %v325 = vld [vmem:[#allocation2 + $0x20] sm:$0xff]
      %v326 = vld [vmem:[#allocation2 + $0x28] sm:$0xff]
      %v327 = vld [vmem:[#allocation2 + $0x30] sm:$0xff]
      %v328 = vld [vmem:[#allocation2 + $0x38] sm:$0xff]
      %v329 = vld [vmem:[#allocation2 + $0x40] sm:$0xff]
      %v330 = vld [vmem:[#allocation2 + $0x48] sm:$0xff]
      %v331 = vld [vmem:[#allocation2 + $0x50] sm:$0xff]
      %v332 = vld [vmem:[#allocation2 + $0x58] sm:$0xff]
      %v333 = vld [vmem:[#allocation2 + $0x60] sm:$0xff]
      %v334 = vld [vmem:[#allocation2 + $0x68] sm:$0xff]
      %v335 = vld [vmem:[#allocation2 + $0x70] sm:$0xff]
      %v336 = vld [vmem:[#allocation2 + $0x78] sm:$0xff]
      %v337 = vld [vmem:[%s274] sm:$0xf]
      %v338 = vld [vmem:[%s274 + $0x4] sm:$0xf]
      %v339 = vld [vmem:[%s274 + $0x8] sm:$0xf]
      %v340 = vld [vmem:[%s274 + $0xc] sm:$0xf]
      %v341 = vld [vmem:[%s274 + $0x10] sm:$0xf]
      %v342 = vld [vmem:[%s274 + $0x14] sm:$0xf]
      %v343 = vld [vmem:[%s274 + $0x18] sm:$0xf]
      %v344 = vld [vmem:[%s274 + $0x1c] sm:$0xf]
      %v345 = vld [vmem:[%s274 + $0x20] sm:$0xf]
      %v346 = vld [vmem:[%s274 + $0x24] sm:$0xf]
      %v347 = vld [vmem:[%s274 + $0x28] sm:$0xf]
      %v348 = vld [vmem:[%s274 + $0x2c] sm:$0xf]
      %v349 = vld [vmem:[%s274 + $0x30] sm:$0xf]
      %v350 = vld [vmem:[%s274 + $0x34] sm:$0xf]
      %v351 = vld [vmem:[%s274 + $0x38] sm:$0xf]
      %v352 = vld [vmem:[%s274 + $0x3c] sm:$0xf]
      %v353 = vld [vmem:[%s283] sm:$0xf]
      %v354 = vld [vmem:[%s283 + $0x4] sm:$0xf]
      %v355 = vld [vmem:[%s283 + $0x8] sm:$0xf]
      %v356 = vld [vmem:[%s283 + $0xc] sm:$0xf]
      %v357 = vld [vmem:[%s283 + $0x10] sm:$0xf]
      %v358 = vld [vmem:[%s283 + $0x14] sm:$0xf]
      %v359 = vld [vmem:[%s283 + $0x18] sm:$0xf]
      %v360 = vld [vmem:[%s283 + $0x1c] sm:$0xf]
      %v361 = vld [vmem:[%s283 + $0x20] sm:$0xf]
      %v362 = vld [vmem:[%s283 + $0x24] sm:$0xf]
      %v363 = vld [vmem:[%s283 + $0x28] sm:$0xf]
      %v364 = vld [vmem:[%s283 + $0x2c] sm:$0xf]
      %v365 = vld [vmem:[%s283 + $0x30] sm:$0xf]
      %v366 = vld [vmem:[%s283 + $0x34] sm:$0xf]
      %v367 = vld [vmem:[%s283 + $0x38] sm:$0xf]
      %v368 = vld [vmem:[%s283 + $0x3c] sm:$0xf]
      %v385 = vunpack.c.l.b16 %v337
      %v386 = vunpack.c.l.b16 %v338
      %v387 = vunpack.c.l.b16 %v339
      %v388 = vunpack.c.l.b16 %v340
      %v389 = vunpack.c.l.b16 %v341
      %v390 = vunpack.c.l.b16 %v342
      %v391 = vunpack.c.l.b16 %v343
      %v392 = vunpack.c.l.b16 %v344
      %v393 = vunpack.c.l.b16 %v345
      %v394 = vunpack.c.l.b16 %v346
      %v395 = vunpack.c.l.b16 %v347
      %v396 = vunpack.c.l.b16 %v348
      %v397 = vunpack.c.l.b16 %v349
      %v398 = vunpack.c.l.b16 %v350
      %v399 = vunpack.c.l.b16 %v351
      %v400 = vunpack.c.l.b16 %v352
      %v401 = vpack.c.b16 %v386, %v385
      %v402 = vpack.c.b16 %v388, %v387
      %v403 = vpack.c.b16 %v390, %v389
      %v404 = vpack.c.b16 %v392, %v391
      %v405 = vpack.c.b16 %v394, %v393
      %v406 = vpack.c.b16 %v396, %v395
      %v407 = vpack.c.b16 %v398, %v397
      %v408 = vpack.c.b16 %v400, %v399
      %v433 = vunpack.c.l.b16 %v353
      %v434 = vunpack.c.l.b16 %v354
      %v435 = vunpack.c.l.b16 %v355
      %v436 = vunpack.c.l.b16 %v356
      %v437 = vunpack.c.l.b16 %v357
      %v438 = vunpack.c.l.b16 %v358
      %v439 = vunpack.c.l.b16 %v359
      %v440 = vunpack.c.l.b16 %v360
      %v441 = vunpack.c.l.b16 %v361
      %v442 = vunpack.c.l.b16 %v362
      %v443 = vunpack.c.l.b16 %v363
      %v444 = vunpack.c.l.b16 %v364
      %v445 = vunpack.c.l.b16 %v365
      %v446 = vunpack.c.l.b16 %v366
      %v447 = vunpack.c.l.b16 %v367
      %v448 = vunpack.c.l.b16 %v368
      %v449 = vpack.c.b16 %v434, %v433
      %v450 = vpack.c.b16 %v436, %v435
      %v451 = vpack.c.b16 %v438, %v437
      %v452 = vpack.c.b16 %v440, %v439
      %v453 = vpack.c.b16 %v442, %v441
      %v454 = vpack.c.b16 %v444, %v443
      %v455 = vpack.c.b16 %v446, %v445
      %v456 = vpack.c.b16 %v448, %v447
      %465 = vmatprep.subr.bf16.mxu0 0
      %466 = vmatpush1.bf16.msra.mxu0 %v456
      %467 = vmatprep.subr.bf16.mxu0 0
      %468 = vmatpush1.bf16.msra.mxu0 %v455
      %469 = vmatprep.subr.bf16.mxu0 0
      %470 = vmatpush1.bf16.msra.mxu0 %v454
      %471 = vmatprep.subr.bf16.mxu0 0
      %472 = vmatpush1.bf16.msra.mxu0 %v453
      %473 = vmatprep.subr.bf16.mxu0 0
      %474 = vmatpush1.bf16.msra.mxu0 %v452
      %475 = vmatprep.subr.bf16.mxu0 0
      %476 = vmatpush1.bf16.msra.mxu0 %v451
      %477 = vmatprep.subr.bf16.mxu0 0
      %478 = vmatpush1.bf16.msra.mxu0 %v450
      %479 = vmatprep.subr.bf16.mxu0 0
      %480 = vmatpush1.bf16.msra.mxu0 %v449
      %481 = vmatprep.subr.bf16.mxu0 0
      %482 = vmatpush2.bf16.msra.mxu0 0
      %483 = vmatprep.subr.bf16.mxu0 0
      %484 = vmatpush2.bf16.msra.mxu0 0
      %485 = vmatprep.subr.bf16.mxu0 0
      %486 = vmatpush2.bf16.msra.mxu0 0
      %487 = vmatprep.subr.bf16.mxu0 0
      %488 = vmatpush2.bf16.msra.mxu0 0
      %489 = vmatprep.subr.bf16.mxu0 0
      %490 = vmatpush2.bf16.msra.mxu0 0
      %491 = vmatprep.subr.bf16.mxu0 0
      %492 = vmatpush2.bf16.msra.mxu0 0
      %493 = vmatprep.subr.bf16.mxu0 0
      %494 = vmatpush2.bf16.msra.mxu0 0
      %495 = vmatprep.subr.bf16.mxu0 0
      %496 = vmatpush2.bf16.msra.mxu0 0
      %497 = vmatprep.mubr.bf16.mxu0 0
      %498 = vmatmul.mubr.bf16.gmra.mxu0 %v401
      %v499 = vpop.f32.mrf.mxu0
      %v500 = vadd.f32 0.0, %v499
      %v501 = vpop.f32.mrf.mxu0
      %v502 = vpop.f32.mrf.mxu0
      %v503 = vadd.f32 0.0, %v502
      %v504 = vpop.f32.mrf.mxu0
      %505 = vmatprep.mubr.bf16.mxu0 0
      %506 = vmatmul.mubr.bf16.gmra.mxu0 %v402
      %v507 = vpop.f32.mrf.mxu0
      %v508 = vadd.f32 0.0, %v507
      %v509 = vpop.f32.mrf.mxu0
      %v510 = vpop.f32.mrf.mxu0
      %v511 = vadd.f32 0.0, %v510
      %v512 = vpop.f32.mrf.mxu0
      %513 = vmatprep.mubr.bf16.mxu0 0
      %514 = vmatmul.mubr.bf16.gmra.mxu0 %v403
      %v515 = vpop.f32.mrf.mxu0
      %v516 = vadd.f32 0.0, %v515
      %v517 = vpop.f32.mrf.mxu0
      %v518 = vpop.f32.mrf.mxu0
      %v519 = vadd.f32 0.0, %v518
      %v520 = vpop.f32.mrf.mxu0
      %521 = vmatprep.mubr.bf16.mxu0 0
      %522 = vmatmul.mubr.bf16.gmra.mxu0 %v404
      %v523 = vpop.f32.mrf.mxu0
      %v524 = vadd.f32 0.0, %v523
      %v525 = vpop.f32.mrf.mxu0
      %v526 = vpop.f32.mrf.mxu0
      %v527 = vadd.f32 0.0, %v526
      %v528 = vpop.f32.mrf.mxu0
      %529 = vmatprep.mubr.bf16.mxu0 0
      %530 = vmatmul.mubr.bf16.gmra.mxu0 %v405
      %v531 = vpop.f32.mrf.mxu0
      %v532 = vadd.f32 0.0, %v531
      %v533 = vpop.f32.mrf.mxu0
      %v534 = vpop.f32.mrf.mxu0
      %v535 = vadd.f32 0.0, %v534
      %v536 = vpop.f32.mrf.mxu0
      %537 = vmatprep.mubr.bf16.mxu0 0
      %538 = vmatmul.mubr.bf16.gmra.mxu0 %v406
      %v539 = vpop.f32.mrf.mxu0
      %v540 = vadd.f32 0.0, %v539
      %v541 = vpop.f32.mrf.mxu0
      %v542 = vpop.f32.mrf.mxu0
      %v543 = vadd.f32 0.0, %v542
      %v544 = vpop.f32.mrf.mxu0
      %545 = vmatprep.mubr.bf16.mxu0 0
      %546 = vmatmul.mubr.bf16.gmra.mxu0 %v407
      %v547 = vpop.f32.mrf.mxu0
      %v548 = vadd.f32 0.0, %v547
      %v549 = vpop.f32.mrf.mxu0
      %v550 = vpop.f32.mrf.mxu0
      %v551 = vadd.f32 0.0, %v550
      %v552 = vpop.f32.mrf.mxu0
      %553 = vmatprep.mubr.bf16.mxu0 0
      %554 = vmatmul.mubr.bf16.gmra.mxu0 %v408
      %v555 = vpop.f32.mrf.mxu0
      %v556 = vadd.f32 0.0, %v555
      %v557 = vpop.f32.mrf.mxu0
      %v558 = vpop.f32.mrf.mxu0
      %v559 = vadd.f32 0.0, %v558
      %v560 = vpop.f32.mrf.mxu0
      %561 = vdwg.mxu0
      %v562 = vadd.f32 %v321, %v500
      %v563 = vadd.f32 %v322, %v503
      %v564 = vadd.f32 %v323, %v508
      %v565 = vadd.f32 %v324, %v511
      %v566 = vadd.f32 %v325, %v516
      %v567 = vadd.f32 %v326, %v519
      %v568 = vadd.f32 %v327, %v524
      %v569 = vadd.f32 %v328, %v527
      %v570 = vadd.f32 %v329, %v532
      %v571 = vadd.f32 %v330, %v535
      %v572 = vadd.f32 %v331, %v540
      %v573 = vadd.f32 %v332, %v543
      %v574 = vadd.f32 %v333, %v548
      %v575 = vadd.f32 %v334, %v551
      %v576 = vadd.f32 %v335, %v556
      %v577 = vadd.f32 %v336, %v559
      %578 = vst [vmem:[#allocation2] sm:$0xff] %v562
      %579 = vst [vmem:[#allocation2 + $0x8] sm:$0xff] %v563
      %580 = vst [vmem:[#allocation2 + $0x10] sm:$0xff] %v564
      %581 = vst [vmem:[#allocation2 + $0x18] sm:$0xff] %v565
      %582 = vst [vmem:[#allocation2 + $0x20] sm:$0xff] %v566
      %583 = vst [vmem:[#allocation2 + $0x28] sm:$0xff] %v567
      %584 = vst [vmem:[#allocation2 + $0x30] sm:$0xff] %v568
      %585 = vst [vmem:[#allocation2 + $0x38] sm:$0xff] %v569
      %586 = vst [vmem:[#allocation2 + $0x40] sm:$0xff] %v570
      %587 = vst [vmem:[#allocation2 + $0x48] sm:$0xff] %v571
      %588 = vst [vmem:[#allocation2 + $0x50] sm:$0xff] %v572
      %589 = vst [vmem:[#allocation2 + $0x58] sm:$0xff] %v573
      %590 = vst [vmem:[#allocation2 + $0x60] sm:$0xff] %v574
      %591 = vst [vmem:[#allocation2 + $0x68] sm:$0xff] %v575
      %592 = vst [vmem:[#allocation2 + $0x70] sm:$0xff] %v576
      %593 = vst [vmem:[#allocation2 + $0x78] sm:$0xff] %v577
      // Predicated region
      $region41: #{bottleneck_forward.4} parent=35 // pred_check
        %p594 = pneg %p301
      $region42: #{bottleneck_forward.4} parent=35 // pred_check_branch
        %596 = sbr.rel (%p594) target = $region44
      $region43: #{bottleneck_forward.4} parent=35 // pred_region
        %v597 = vld [vmem:[#allocation2] sm:$0xff]
        %v598 = vld [vmem:[#allocation2 + $0x8] sm:$0xff]
        %v599 = vld [vmem:[#allocation2 + $0x10] sm:$0xff]
        %v600 = vld [vmem:[#allocation2 + $0x18] sm:$0xff]
        %v601 = vld [vmem:[#allocation2 + $0x20] sm:$0xff]
        %v602 = vld [vmem:[#allocation2 + $0x28] sm:$0xff]
        %v603 = vld [vmem:[#allocation2 + $0x30] sm:$0xff]
        %v604 = vld [vmem:[#allocation2 + $0x38] sm:$0xff]
        %v605 = vld [vmem:[#allocation2 + $0x40] sm:$0xff]
        %v606 = vld [vmem:[#allocation2 + $0x48] sm:$0xff]
        %v607 = vld [vmem:[#allocation2 + $0x50] sm:$0xff]
        %v608 = vld [vmem:[#allocation2 + $0x58] sm:$0xff]
        %v609 = vld [vmem:[#allocation2 + $0x60] sm:$0xff]
        %v610 = vld [vmem:[#allocation2 + $0x68] sm:$0xff]
        %v611 = vld [vmem:[#allocation2 + $0x70] sm:$0xff]
        %v612 = vld [vmem:[#allocation2 + $0x78] sm:$0xff]
        %v613 = vld [vmem:[%s287] sm:$0x1]
        %v615 = vlaneseq
        %v616 = vshrl.u32 %v615, 7
        %v617 = vsub.s32 0, %v616
        %v618 = vrot.slane %v613, %v617
        %v620 = vmul.f32 %v597, %v618
        %v621 = vmul.f32 %v598, %v618
        %v622 = vmul.f32 %v599, %v618
        %v623 = vmul.f32 %v600, %v618
        %v624 = vmul.f32 %v601, %v618
        %v625 = vmul.f32 %v602, %v618
        %v626 = vmul.f32 %v603, %v618
        %v627 = vmul.f32 %v604, %v618
        %v628 = vmul.f32 %v605, %v618
        %v629 = vmul.f32 %v606, %v618
        %v630 = vmul.f32 %v607, %v618
        %v631 = vmul.f32 %v608, %v618
        %v632 = vmul.f32 %v609, %v618
        %v633 = vmul.f32 %v610, %v618
        %v634 = vmul.f32 %v611, %v618
        %v635 = vmul.f32 %v612, %v618
        %v636 = vld [vmem:[%s290] sm:$0x1]
        %v638 = vlaneseq
        %v639 = vshrl.u32 %v638, 7
        %v640 = vsub.s32 0, %v639
        %v641 = vrot.slane %v636, %v640
        %v643 = vadd.f32 %v620, %v641
        %v644 = vadd.f32 %v621, %v641
        %v645 = vadd.f32 %v622, %v641
        %v646 = vadd.f32 %v623, %v641
        %v647 = vadd.f32 %v624, %v641
        %v648 = vadd.f32 %v625, %v641
        %v649 = vadd.f32 %v626, %v641
        %v650 = vadd.f32 %v627, %v641
        %v651 = vadd.f32 %v628, %v641
        %v652 = vadd.f32 %v629, %v641
        %v653 = vadd.f32 %v630, %v641
        %v654 = vadd.f32 %v631, %v641
        %v655 = vadd.f32 %v632, %v641
        %v656 = vadd.f32 %v633, %v641
        %v657 = vadd.f32 %v634, %v641
        %v658 = vadd.f32 %v635, %v641
        %v659 = vmax.f32 %v643, 0.0
        %v660 = vmax.f32 %v644, 0.0
        %v661 = vmax.f32 %v645, 0.0
        %v662 = vmax.f32 %v646, 0.0
        %v663 = vmax.f32 %v647, 0.0
        %v664 = vmax.f32 %v648, 0.0
        %v665 = vmax.f32 %v649, 0.0
        %v666 = vmax.f32 %v650, 0.0
        %v667 = vmax.f32 %v651, 0.0
        %v668 = vmax.f32 %v652, 0.0
        %v669 = vmax.f32 %v653, 0.0
        %v670 = vmax.f32 %v654, 0.0
        %v671 = vmax.f32 %v655, 0.0
        %v672 = vmax.f32 %v656, 0.0
        %v673 = vmax.f32 %v657, 0.0
        %v674 = vmax.f32 %v658, 0.0
        %675 = vst [vmem:[%s298] sm:$0xff] %v659
        %676 = vst [vmem:[%s298 + $0x8] sm:$0xff] %v660
        %677 = vst [vmem:[%s298 + $0x10] sm:$0xff] %v661
        %678 = vst [vmem:[%s298 + $0x18] sm:$0xff] %v662
        %679 = vst [vmem:[%s298 + $0x20] sm:$0xff] %v663
        %680 = vst [vmem:[%s298 + $0x28] sm:$0xff] %v664
        %681 = vst [vmem:[%s298 + $0x30] sm:$0xff] %v665
        %682 = vst [vmem:[%s298 + $0x38] sm:$0xff] %v666
        %683 = vst [vmem:[%s298 + $0x40] sm:$0xff] %v667
        %684 = vst [vmem:[%s298 + $0x48] sm:$0xff] %v668
        %685 = vst [vmem:[%s298 + $0x50] sm:$0xff] %v669
        %686 = vst [vmem:[%s298 + $0x58] sm:$0xff] %v670
        %687 = vst [vmem:[%s298 + $0x60] sm:$0xff] %v671
        %688 = vst [vmem:[%s298 + $0x68] sm:$0xff] %v672
        %689 = vst [vmem:[%s298 + $0x70] sm:$0xff] %v673
        %690 = vst [vmem:[%s298 + $0x78] sm:$0xff] %v674
      $region44: #{bottleneck_forward.4} parent=35 // pred_fallthru
        _
      %s691 = smul.u32 16, %s20
      %p692 = scmp.lt.s32.totalorder %s691, 63
      %s693 = scalar_select %p692, %s691, 63
      %p694 = scmp.lt.s32.totalorder %s21, 0
      %s695 = scalar_select %p694, %s21, 0
      %s696 = sadd.s32 %s695, %s693
      %s697 = smul.addr %s696, 8
      %s698 = scalar_lea.vmem %s4, %s697
      // Predicated region
      $region45: #{bottleneck_forward.4} parent=35 // pred_check
        %p699 = pneg %p162
      $region46: #{bottleneck_forward.4} parent=35 // pred_check_branch
        %701 = sbr.rel (%p699) target = $region48
      $region47: #{bottleneck_forward.4} parent=35 // pred_region
        %s702 = smul.u32 16, %s20
      $region48: #{bottleneck_forward.4} parent=35 // pred_fallthru
        _
    $region36: #{bottleneck_forward.4} parent=5 // pred_fallthru
      _
    %p703 = scmp.le.s32.totalorder 2, %s10
    // Predicated region
    $region49: #{bottleneck_forward.4} parent=5 // pred_check
      %p704 = pneg %p703
    $region50: #{bottleneck_forward.4} parent=5 // pred_check_branch
      %706 = sbr.rel (%p704) target = $region52
    $region51: #{bottleneck_forward.4} parent=5 // pred_region
      %s707 = ssub.s32 %s10, 2
      // Predicated region
      $region53: #{bottleneck_forward.4} parent=51 // pred_check
        %p708 = pneg %p168
      $region54: #{bottleneck_forward.4} parent=51 // pred_check_branch
        %710 = sbr.rel (%p708) target = $region56
      $region55: #{bottleneck_forward.4} parent=51 // pred_region
        %s711 = smul.u32 16, %s23
        %p712 = scmp.lt.s32.totalorder %s711, 63
        %s713 = scalar_select %p712, %s711, 63
        %p714 = scmp.lt.s32.totalorder %s24, 0
        %s715 = scalar_select %p714, %s24, 0
        %s716 = sadd.s32 %s715, %s713
        %s717 = smul.addr %s716, 8
        %s718 = scalar_lea.vmem %s4, %s717
      $region56: #{bottleneck_forward.4} parent=51 // pred_fallthru
        _
    $region52: #{bottleneck_forward.4} parent=5 // pred_fallthru
      _
  $region6: #{bottleneck_forward.4} parent=0 // loop_footer
    %s14 = sadd.s32 1, %s10
  $region7: #{bottleneck_forward.4} parent=0 // loop_footer_branch
    %9 = sbr.rel target = $region3
  $region8: #{bottleneck_forward.4} parent=0 // loop_exit
    _

// kernel: bottleneck_forward.5
$region0: #{bottleneck_forward.5}
  #allocation0 [shape = 'u32[]', space=smem, size = 0x4, offset = 0x4, fixed_abs, tag = 'smem constant byte address 0x4 - core index']
  #allocation1 [shape = 'u32[144,128]{1,0:T(1,128)}', space=vmem, size = 0x12000, scoped, tag = 'internal scratch']
  #allocation2 [shape = 'f32[128,128]{1,0:T(8,128)}', space=vmem, size = 0x10000, scoped, tag = 'scratch operand']
  %s0 = inlined_call_operand.vmem [shape: bf16[128,384], index: 0, kind: input, shape index: {}]
  %s1 = inlined_call_operand.vmem [shape: bf16[384,128], index: 1, kind: input, shape index: {}]
  %s2 = inlined_call_operand.vmem [shape: f32[1,128], index: 2, kind: input, shape index: {}]
  %s3 = inlined_call_operand.vmem [shape: f32[1,128], index: 3, kind: input, shape index: {}]
  %s4 = inlined_call_operand.vmem [shape: f32[128,128], index: 4, kind: output, shape index: {}]
  %s5 = sld [smem:[#allocation0]]
  $region98: #{bottleneck_forward.5} parent=0
    _
  %s7 = ssub.s32 1, %s5
  %s8 = scalar_select 0, %s7, %s5
  $region1: #{bottleneck_forward.5} parent=0
    #allocation3 [shape = 'u8[65536]{0}', space=vmem, size = 0x10000, scoped, tag = 'input window, operand 0']
    loop: start=0, step=1, limit=5
    $region2: #{bottleneck_forward.5} parent=1 // loop_pre_header
      _
    $region3: #{bottleneck_forward.5} parent=1 // loop_header
      %s10 = sphi 0, %s14
      %p11 = scmp.ge.s32.totalorder %s10, 5
      %s17 = sphi 0, %s36
      %s18 = sphi 0, %s32
      %s19 = sphi 0, %s28
      %s20 = sphi 0, %s17
      %s21 = sphi 0, %s18
      %s22 = sphi 0, %s19
      %s23 = sphi 0, %s20
      %s24 = sphi 0, %s21
      %s25 = sphi 0, %s22
      %s41 = sphi 0, %s43
      %s44 = sphi 0, %s41
      %s45 = sphi 0, %s44
      %s61 = sphi 0, %s45
      %s69 = sphi 0, %s71
      %s72 = sphi 0, %s69
      %s73 = sphi 0, %s72
      %s89 = sphi 0, %s73
      %s95 = sphi 0, %s97
      %s98 = sphi 0, %s95
      %s99 = sphi 0, %s98
      %s115 = sphi 0, %s99
      %s121 = sphi 0, %s123
      %s124 = sphi 0, %s121
      %s125 = sphi 0, %s124
      %s141 = sphi 0, %s125
      %s149 = sphi 0, %s151
      %s152 = sphi 0, %s149
      %s153 = sphi 0, %s152
      %s169 = sphi 0, %s153
    $region4: #{bottleneck_forward.5} parent=1 // loop_header_branch
      %13 = sbr.rel (%p11) target = $region8
    $region5: #{bottleneck_forward.5} parent=1 // loop_body
      %s15 = ssub.s32 %s10, 1
      %s16 = ssub.s32 %s10, 2
      %s26 = sadd.s32 1, %s19
      %p27 = scmp.ge.s32.totalorder %s26, 3
      %s28 = scalar_select %p27, 0, %s26
      %s29 = sadd.s32 1, %s18
      %s30 = scalar_select %p27, %s29, %s18
      %p31 = scmp.ge.s32.totalorder %s30, 1
      %s32 = scalar_select %p31, 0, %s30
      %s33 = sadd.s32 1, %s17
      %s34 = scalar_select %p31, %s33, %s17
      %p35 = scmp.ge.s32.totalorder %s34, 1
      %s36 = scalar_select %p35, 0, %s34
      %s37 = ssub.s32 %s17, %s36
      %s38 = ssub.s32 %s19, %s28
      %s39 = sor.u32 %s37, %s38
      %p40 = scmp.eq.s32.totalorder %s39, 0
      %s42 = sadd.s32 %s41, 1
      %s43 = scalar_select %p40, %s41, %s42
      %p46 = pneg %p40
      %p47 = scmp.eq.s32.totalorder %s10, 2
      %p48 = por %p46, %p47
      %p49 = scmp.ne.s32.totalorder %s41, %s44
      %p50 = scmp.eq.s32.totalorder %s10, 0
      %p51 = por %p49, %p50
      %p52 = scmp.ne.s32.totalorder %s41, %s44
      %p53 = scmp.eq.s32.totalorder %s15, 2
      %p54 = por %p52, %p53
      %p55 = scmp.ne.s32.totalorder %s44, %s45
      %p56 = scmp.eq.s32.totalorder %s15, 0
      %p57 = por %p55, %p56
      %p58 = scmp.ne.s32.totalorder %s44, %s45
      %p59 = scmp.eq.s32.totalorder %s16, 2
      %p60 = por %p58, %p59
      %p62 = scmp.ne.s32.totalorder %s45, %s61
      %p63 = scmp.eq.s32.totalorder %s16, 0
      %p64 = por %p62, %p63
      %s65 = ssub.s32 %s19, %s28
      %s66 = ssub.s32 %s18, %s32
      %s67 = sor.u32 %s65, %s66
      %p68 = scmp.eq.s32.totalorder %s67, 0
      %s70 = sadd.s32 %s69, 1
      %s71 = scalar_select %p68, %s69, %s70
      %p74 = pneg %p68
      %p75 = scmp.eq.s32.totalorder %s10, 2
      %p76 = por %p74, %p75
      %p77 = scmp.ne.s32.totalorder %s69, %s72
      %p78 = scmp.eq.s32.totalorder %s10, 0
      %p79 = por %p77, %p78
      %p80 = scmp.ne.s32.totalorder %s69, %s72
      %p81 = scmp.eq.s32.totalorder %s15, 2
      %p82 = por %p80, %p81
      %p83 = scmp.ne.s32.totalorder %s72, %s73
      %p84 = scmp.eq.s32.totalorder %s15, 0
      %p85 = por %p83, %p84
      %p86 = scmp.ne.s32.totalorder %s72, %s73
      %p87 = scmp.eq.s32.totalorder %s16, 2
      %p88 = por %p86, %p87
      %p90 = scmp.ne.s32.totalorder %s73, %s89
      %p91 = scmp.eq.s32.totalorder %s16, 0
      %p92 = por %p90, %p91
      %s93 = ssub.s32 %s18, %s32
      %p94 = scmp.eq.s32.totalorder %s93, 0
      %s96 = sadd.s32 %s95, 1
      %s97 = scalar_select %p94, %s95, %s96
      %p100 = pneg %p94
      %p101 = scmp.eq.s32.totalorder %s10, 2
      %p102 = por %p100, %p101
      %p103 = scmp.ne.s32.totalorder %s95, %s98
      %p104 = scmp.eq.s32.totalorder %s10, 0
      %p105 = por %p103, %p104
      %p106 = scmp.ne.s32.totalorder %s95, %s98
      %p107 = scmp.eq.s32.totalorder %s15, 2
      %p108 = por %p106, %p107
      %p109 = scmp.ne.s32.totalorder %s98, %s99
      %p110 = scmp.eq.s32.totalorder %s15, 0
      %p111 = por %p109, %p110
      %p112 = scmp.ne.s32.totalorder %s98, %s99
      %p113 = scmp.eq.s32.totalorder %s16, 2
      %p114 = por %p112, %p113
      %p116 = scmp.ne.s32.totalorder %s99, %s115
      %p117 = scmp.eq.s32.totalorder %s16, 0
      %p118 = por %p116, %p117
      %s119 = ssub.s32 %s18, %s32
      %p120 = scmp.eq.s32.totalorder %s119, 0
      %s122 = sadd.s32 %s121, 1
      %s123 = scalar_select %p120, %s121, %s122
      %p126 = pneg %p120
      %p127 = scmp.eq.s32.totalorder %s10, 2
      %p128 = por %p126, %p127
      %p129 = scmp.ne.s32.totalorder %s121, %s124
      %p130 = scmp.eq.s32.totalorder %s10, 0
      %p131 = por %p129, %p130
      %p132 = scmp.ne.s32.totalorder %s121, %s124
      %p133 = scmp.eq.s32.totalorder %s15, 2
      %p134 = por %p132, %p133
      %p135 = scmp.ne.s32.totalorder %s124, %s125
      %p136 = scmp.eq.s32.totalorder %s15, 0
      %p137 = por %p135, %p136
      %p138 = scmp.ne.s32.totalorder %s124, %s125
      %p139 = scmp.eq.s32.totalorder %s16, 2
      %p140 = por %p138, %p139
      %p142 = scmp.ne.s32.totalorder %s125, %s141
      %p143 = scmp.eq.s32.totalorder %s16, 0
      %p144 = por %p142, %p143
      %s145 = ssub.s32 %s17, %s36
      %s146 = ssub.s32 %s18, %s32
      %s147 = sor.u32 %s145, %s146
      %p148 = scmp.eq.s32.totalorder %s147, 0
      %s150 = sadd.s32 %s149, 1
      %s151 = scalar_select %p148, %s149, %s150
      %p154 = pneg %p148
      %p155 = scmp.eq.s32.totalorder %s10, 2
      %p156 = por %p154, %p155
      %p157 = scmp.ne.s32.totalorder %s149, %s152
      %p158 = scmp.eq.s32.totalorder %s10, 0
      %p159 = por %p157, %p158
      %p160 = scmp.ne.s32.totalorder %s149, %s152
      %p161 = scmp.eq.s32.totalorder %s15, 2
      %p162 = por %p160, %p161
      %p163 = scmp.ne.s32.totalorder %s152, %s153
      %p164 = scmp.eq.s32.totalorder %s15, 0
      %p165 = por %p163, %p164
      %p166 = scmp.ne.s32.totalorder %s152, %s153
      %p167 = scmp.eq.s32.totalorder %s16, 2
      %p168 = por %p166, %p167
      %p170 = scmp.ne.s32.totalorder %s153, %s169
      %p171 = scmp.eq.s32.totalorder %s16, 0
      %p172 = por %p170, %p171
      %p173 = scmp.le.s32.totalorder 1, %s10
      %p174 = scmp.lt.s32.totalorder %s10, 4
      %p175 = pnand %p173, %p174
      %p176 = pneg %p175
      // Predicated region
      $region9: #{bottleneck_forward.5} parent=5 // pred_check
        _
      $region10: #{bottleneck_forward.5} parent=5 // pred_check_branch
        %178 = sbr.rel (%p175) target = $region12
      $region11: #{bottleneck_forward.5} parent=5 // pred_region
        %s179 = ssub.s32 %s10, 1
        // Predicated region
        $region13: #{bottleneck_forward.5} parent=11 // pred_check
          %p180 = pneg %p111
        $region14: #{bottleneck_forward.5} parent=11 // pred_check_branch
          %182 = sbr.rel (%p180) target = $region16
        $region15: #{bottleneck_forward.5} parent=11 // pred_region
          %p183 = scmp.lt.s32.totalorder %s21, 0
          %s184 = scalar_select %p183, %s21, 0
          %s185 = scalar_lea.vmem %s2, %s184
        $region16: #{bottleneck_forward.5} parent=11 // pred_fallthru
          _
        // Predicated region
        $region17: #{bottleneck_forward.5} parent=11 // pred_check
          %p186 = pneg %p137
        $region18: #{bottleneck_forward.5} parent=11 // pred_check_branch
          %188 = sbr.rel (%p186) target = $region20
        $region19: #{bottleneck_forward.5} parent=11 // pred_region
          %p189 = scmp.lt.s32.totalorder %s21, 0
          %s190 = scalar_select %p189, %s21, 0
          %s191 = scalar_lea.vmem %s3, %s190
        $region20: #{bottleneck_forward.5} parent=11 // pred_fallthru
          _
      $region12: #{bottleneck_forward.5} parent=5 // pred_fallthru
        _
      %p192 = scmp.lt.s32.totalorder %s10, 3
      // Predicated region
      $region21: #{bottleneck_forward.5} parent=5 // pred_check
        %p193 = pneg %p192
      $region22: #{bottleneck_forward.5} parent=5 // pred_check_branch
        %195 = sbr.rel (%p193) target = $region24
      $region23: #{bottleneck_forward.5} parent=5 // pred_region
        // Predicated region
        $region25: #{bottleneck_forward.5} parent=23 // pred_check
          %p196 = pneg %p51
        $region26: #{bottleneck_forward.5} parent=23 // pred_check_branch
          %198 = sbr.rel (%p196) target = $region28
        $region27: #{bottleneck_forward.5} parent=23 // pred_region
          %s199 = sand.u32 %s41, 1
          %s200 = sand.u32 %s41, 1
          %s201 = smul.addr %s200, 64
          %s202 = scalar_lea.vmem [#allocation3], %s201
          %s203 = smul.u32 16, %s17
          %s204 = smul.addr %s203, 3
          %s205 = sadd.s32 %s19, %s204
          %s206 = smul.addr %s205, 4
          %s207 = scalar_lea.vmem %s0, %s206
          // Predicated region
          $region29: #{bottleneck_forward.5} parent=27 // pred_check
            _
          $region30: #{bottleneck_forward.5} parent=27 // pred_check_branch
            %209 = sbr.rel (0) target = $region32
          $region31: #{bottleneck_forward.5} parent=27 // pred_region
            // Predicated region
            $region33: #{bottleneck_forward.5} parent=31 // pred_check
              _
            $region34: #{bottleneck_forward.5} parent=31 // pred_check_branch
              %211 = sbr.rel target = $region36
            $region35: #{bottleneck_forward.5} parent=31 // pred_region
              // Predicated region
              $region48: #{bottleneck_forward.5} parent=35 // pred_check
                _
              $region49: #{bottleneck_forward.5} parent=35 // pred_check_branch
                %257 = sbr.rel (0) target = $region51
              $region50: #{bottleneck_forward.5} parent=35 // pred_region
                loop: start=0, step=1, limit=1
                $region52: #{bottleneck_forward.5} parent=50 // loop_pre_header
                  _
                $region53: #{bottleneck_forward.5} parent=50 // loop_header
                  %s259 = sphi 0, %s263
                  %p260 = scmp.ge.s32.totalorder %s259, 1
                  %s264 = sphi %s207, %s207
                  %s265 = sphi %s202, %s202
                $region54: #{bottleneck_forward.5} parent=50 // loop_header_branch
                  %262 = sbr.rel (%p260) target = $region58
                $region55: #{bottleneck_forward.5} parent=50 // loop_body
                  _
                $region56: #{bottleneck_forward.5} parent=50 // loop_footer
                  %s263 = sadd.s32 1, %s259
                $region57: #{bottleneck_forward.5} parent=50 // loop_footer_branch
                  %258 = sbr.rel target = $region53
                $region58: #{bottleneck_forward.5} parent=50 // loop_exit
                  _
                %s267 = ssub.s32 16, 1
                loop: start=0, step=1, limit=1
                $region59: #{bottleneck_forward.5} parent=50 // loop_pre_header
                  _
                $region60: #{bottleneck_forward.5} parent=50 // loop_header
                  %s269 = sphi 0, %s273
                  %p270 = scmp.ge.s32.totalorder %s269, 1
                  %s274 = sphi %s207, %s207
                  %s275 = sphi %s202, %s202
                $region61: #{bottleneck_forward.5} parent=50 // loop_header_branch
                  %272 = sbr.rel (%p270) target = $region65
                $region62: #{bottleneck_forward.5} parent=50 // loop_body
                  %v276 = vld [vmem:[%s274] sm:%s267]
                  %277 = vst [vmem:[%s275] sm:%s267] %v276
                  %v278 = vld [vmem:[%s274 + $0xc] sm:%s267]
                  %279 = vst [vmem:[%s275 + $0x4] sm:%s267] %v278
                  %v280 = vld [vmem:[%s274 + $0x18] sm:%s267]
                  %281 = vst [vmem:[%s275 + $0x8] sm:%s267] %v280
                  %v282 = vld [vmem:[%s274 + $0x24] sm:%s267]
                  %283 = vst [vmem:[%s275 + $0xc] sm:%s267] %v282
                  %v284 = vld [vmem:[%s274 + $0x30] sm:%s267]
                  %285 = vst [vmem:[%s275 + $0x10] sm:%s267] %v284
                  %v286 = vld [vmem:[%s274 + $0x3c] sm:%s267]
                  %287 = vst [vmem:[%s275 + $0x14] sm:%s267] %v286
                  %v288 = vld [vmem:[%s274 + $0x48] sm:%s267]
                  %289 = vst [vmem:[%s275 + $0x18] sm:%s267] %v288
                  %v290 = vld [vmem:[%s274 + $0x54] sm:%s267]
                  %291 = vst [vmem:[%s275 + $0x1c] sm:%s267] %v290
                  %v292 = vld [vmem:[%s274 + $0x60] sm:%s267]
                  %293 = vst [vmem:[%s275 + $0x20] sm:%s267] %v292
                  %v294 = vld [vmem:[%s274 + $0x6c] sm:%s267]
                  %295 = vst [vmem:[%s275 + $0x24] sm:%s267] %v294
                  %v296 = vld [vmem:[%s274 + $0x78] sm:%s267]
                  %297 = vst [vmem:[%s275 + $0x28] sm:%s267] %v296
                  %v298 = vld [vmem:[%s274 + $0x84] sm:%s267]
                  %299 = vst [vmem:[%s275 + $0x2c] sm:%s267] %v298
                  %v300 = vld [vmem:[%s274 + $0x90] sm:%s267]
                  %301 = vst [vmem:[%s275 + $0x30] sm:%s267] %v300
                  %v302 = vld [vmem:[%s274 + $0x9c] sm:%s267]
                  %303 = vst [vmem:[%s275 + $0x34] sm:%s267] %v302
                  %v304 = vld [vmem:[%s274 + $0xa8] sm:%s267]
                  %305 = vst [vmem:[%s275 + $0x38] sm:%s267] %v304
                  %v306 = vld [vmem:[%s274 + $0xb4] sm:%s267]
                  %307 = vst [vmem:[%s275 + $0x3c] sm:%s267] %v306
                $region63: #{bottleneck_forward.5} parent=50 // loop_footer
                  %s273 = sadd.s32 1, %s269
                $region64: #{bottleneck_forward.5} parent=50 // loop_footer_branch
                  %268 = sbr.rel target = $region60
                $region65: #{bottleneck_forward.5} parent=50 // loop_exit
                  _
              $region51: #{bottleneck_forward.5} parent=35 // pred_fallthru
                _
            $region36: #{bottleneck_forward.5} parent=31 // pred_fallthru
              _
            // Predicated region
            $region37: #{bottleneck_forward.5} parent=31 // pred_check
              _
            $region38: #{bottleneck_forward.5} parent=31 // pred_check_branch
              %213 = sbr.rel (0) target = $region40
            $region39: #{bottleneck_forward.5} parent=31 // pred_region
              %s215 = ssub.s32 16, 1
              loop: start=0, step=1, limit=1
              $region41: #{bottleneck_forward.5} parent=39 // loop_pre_header
                _
              $region42: #{bottleneck_forward.5} parent=39 // loop_header
                %s217 = sphi 0, %s221
                %p218 = scmp.ge.s32.totalorder %s217, 1
                %s222 = sphi %s207, %s207
                %s223 = sphi %s202, %s202
              $region43: #{bottleneck_forward.5} parent=39 // loop_header_branch
                %220 = sbr.rel (%p218) target = $region47
              $region44: #{bottleneck_forward.5} parent=39 // loop_body
                %v224 = vld [vmem:[%s222] sm:%s215]
                %225 = vst [vmem:[%s223] sm:%s215] %v224
                %v226 = vld [vmem:[%s222 + $0xc] sm:%s215]
                %227 = vst [vmem:[%s223 + $0x4] sm:%s215] %v226
                %v228 = vld [vmem:[%s222 + $0x18] sm:%s215]
                %229 = vst [vmem:[%s223 + $0x8] sm:%s215] %v228
                %v230 = vld [vmem:[%s222 + $0x24] sm:%s215]
                %231 = vst [vmem:[%s223 + $0xc] sm:%s215] %v230
                %v232 = vld [vmem:[%s222 + $0x30] sm:%s215]
                %233 = vst [vmem:[%s223 + $0x10] sm:%s215] %v232
                %v234 = vld [vmem:[%s222 + $0x3c] sm:%s215]
                %235 = vst [vmem:[%s223 + $0x14] sm:%s215] %v234
                %v236 = vld [vmem:[%s222 + $0x48] sm:%s215]
                %237 = vst [vmem:[%s223 + $0x18] sm:%s215] %v236
                %v238 = vld [vmem:[%s222 + $0x54] sm:%s215]
                %239 = vst [vmem:[%s223 + $0x1c] sm:%s215] %v238
                %v240 = vld [vmem:[%s222 + $0x60] sm:%s215]
                %241 = vst [vmem:[%s223 + $0x20] sm:%s215] %v240
                %v242 = vld [vmem:[%s222 + $0x6c] sm:%s215]
                %243 = vst [vmem:[%s223 + $0x24] sm:%s215] %v242
                %v244 = vld [vmem:[%s222 + $0x78] sm:%s215]
                %245 = vst [vmem:[%s223 + $0x28] sm:%s215] %v244
                %v246 = vld [vmem:[%s222 + $0x84] sm:%s215]
                %247 = vst [vmem:[%s223 + $0x2c] sm:%s215] %v246
                %v248 = vld [vmem:[%s222 + $0x90] sm:%s215]
                %249 = vst [vmem:[%s223 + $0x30] sm:%s215] %v248
                %v250 = vld [vmem:[%s222 + $0x9c] sm:%s215]
                %251 = vst [vmem:[%s223 + $0x34] sm:%s215] %v250
                %v252 = vld [vmem:[%s222 + $0xa8] sm:%s215]
                %253 = vst [vmem:[%s223 + $0x38] sm:%s215] %v252
                %v254 = vld [vmem:[%s222 + $0xb4] sm:%s215]
                %255 = vst [vmem:[%s223 + $0x3c] sm:%s215] %v254
              $region45: #{bottleneck_forward.5} parent=39 // loop_footer
                %s221 = sadd.s32 1, %s217
              $region46: #{bottleneck_forward.5} parent=39 // loop_footer_branch
                %216 = sbr.rel target = $region42
              $region47: #{bottleneck_forward.5} parent=39 // loop_exit
                _
            $region40: #{bottleneck_forward.5} parent=31 // pred_fallthru
              _
          $region32: #{bottleneck_forward.5} parent=27 // pred_fallthru
            _
          %308 = vnop
        $region28: #{bottleneck_forward.5} parent=23 // pred_fallthru
          _
        // Predicated region
        $region66: #{bottleneck_forward.5} parent=23 // pred_check
          %p309 = pneg %p79
        $region67: #{bottleneck_forward.5} parent=23 // pred_check_branch
          %311 = sbr.rel (%p309) target = $region69
        $region68: #{bottleneck_forward.5} parent=23 // pred_region
          %s312 = smul.u32 16, %s19
          %p313 = scmp.lt.s32.totalorder %s312, 47
          %s314 = scalar_select %p313, %s312, 47
          %p315 = scmp.lt.s32.totalorder %s18, 0
          %s316 = scalar_select %p315, %s18, 0
          %s317 = sadd.s32 %s316, %s314
          %s318 = smul.addr %s317, 4
          %s319 = scalar_lea.vmem %s1, %s318
          %s320 = smul.u32 16, %s19
        $region69: #{bottleneck_forward.5} parent=23 // pred_fallthru
          _
      $region24: #{bottleneck_forward.5} parent=5 // pred_fallthru
        _
      %p321 = scmp.le.s32.totalorder 1, %s10
      %p322 = scmp.lt.s32.totalorder %s10, 4
      %p323 = pnand %p321, %p322
      %p324 = pneg %p323
      // Predicated region
      $region70: #{bottleneck_forward.5} parent=5 // pred_check
        _
      $region71: #{bottleneck_forward.5} parent=5 // pred_check_branch
        %326 = sbr.rel (%p323) target = $region73
      $region72: #{bottleneck_forward.5} parent=5 // pred_region
        %s327 = ssub.s32 %s10, 1
        %s328 = sand.u32 %s44, 1
        %s329 = sand.u32 %s44, 1
        %s330 = smul.addr %s329, 64
        %s331 = scalar_lea.vmem [#allocation3], %s330
        // Predicated region
        $region74: #{bottleneck_forward.5} parent=72 // pred_check
          %p332 = pneg %p57
        $region75: #{bottleneck_forward.5} parent=72 // pred_check_branch
          %334 = sbr.rel (%p332) target = $region77
        $region76: #{bottleneck_forward.5} parent=72 // pred_region
          _
        $region77: #{bottleneck_forward.5} parent=72 // pred_fallthru
          _
        %s335 = sand.u32 %s44, 1
        %s336 = sand.u32 %s44, 1
        %s337 = smul.addr %s336, 64
        %s338 = scalar_lea.vmem [#allocation3], %s337
        %p339 = pneg %p57
        %p340 = pneg %p54
        %s341 = smul.u32 16, %s22
        %p342 = scmp.lt.s32.totalorder %s341, 47
        %s343 = scalar_select %p342, %s341, 47
        %p344 = scmp.lt.s32.totalorder %s21, 0
        %s345 = scalar_select %p344, %s21, 0
        %s346 = sadd.s32 %s345, %s343
        %s347 = smul.addr %s346, 4
        %s348 = scalar_lea.vmem %s1, %s347
        %p349 = pneg %p85
        %p350 = pneg %p82
        %p351 = scmp.lt.s32.totalorder %s21, 0
        %s352 = scalar_select %p351, %s21, 0
        %s353 = scalar_lea.vmem %s2, %s352
        %p354 = pneg %p111
        %p355 = pneg %p108
        %p356 = scmp.lt.s32.totalorder %s21, 0
        %s357 = scalar_select %p356, %s21, 0
        %s358 = scalar_lea.vmem %s3, %s357
        %p359 = pneg %p137
        %p360 = pneg %p134
        %p361 = pneg %p165
        %p362 = pneg %p162
        %s363 = smul.u32 16, %s20
        %p364 = scmp.lt.s32.totalorder %s363, 15
        %s365 = scalar_select %p364, %s363, 15
        %p366 = scmp.lt.s32.totalorder %s21, 0
        %s367 = scalar_select %p366, %s21, 0
        %s368 = sadd.s32 %s367, %s365
        %s369 = smul.addr %s368, 8
        %s370 = scalar_lea.vmem %s4, %s369
        %s371 = smul.u32 16, %s20
        %s372 = smul.u32 16, %s22
        %p373 = scmp.lt.s32.totalorder %s372, 47
        %s374 = scalar_select %p373, %s372, 47
        %p375 = scmp.lt.s32.totalorder %s21, 0
        %s376 = scalar_select %p375, %s21, 0
        %s377 = sadd.s32 %s376, %s374
        %s378 = smul.addr %s377, 4
        %s379 = scalar_lea.vmem %s1, %s378
        %s380 = smul.u32 16, %s22
        %p381 = scmp.lt.s32.totalorder %s21, 0
        %s382 = scalar_select %p381, %s21, 0
        %s383 = scalar_lea.vmem %s2, %s382
        %p384 = scmp.lt.s32.totalorder %s21, 0
        %s385 = scalar_select %p384, %s21, 0
        %s386 = scalar_lea.vmem %s3, %s385
        %s387 = smul.u32 16, %s20
        %p388 = scmp.lt.s32.totalorder %s387, 15
        %s389 = scalar_select %p388, %s387, 15
        %p390 = scmp.lt.s32.totalorder %s21, 0
        %s391 = scalar_select %p390, %s21, 0
        %s392 = sadd.s32 %s391, %s389
        %s393 = smul.addr %s392, 8
        %s394 = scalar_lea.vmem %s4, %s393
        %s395 = smul.u32 16, %s20
        %p397 = scmp.eq.s32.totalorder %s22, 0
        // Predicated region
        $region78: #{bottleneck_forward.5} parent=72 // pred_check
          %p398 = pneg %p397
        $region79: #{bottleneck_forward.5} parent=72 // pred_check_branch
          %400 = sbr.rel (%p398) target = $region81
        $region80: #{bottleneck_forward.5} parent=72 // pred_region
          %401 = vst [vmem:[#allocation2] sm:$0xff] 0.0
          %402 = vst [vmem:[#allocation2 + $0x8] sm:$0xff] 0.0
          %403 = vst [vmem:[#allocation2 + $0x10] sm:$0xff] 0.0
          %404 = vst [vmem:[#allocation2 + $0x18] sm:$0xff] 0.0
          %405 = vst [vmem:[#allocation2 + $0x20] sm:$0xff] 0.0
          %406 = vst [vmem:[#allocation2 + $0x28] sm:$0xff] 0.0
          %407 = vst [vmem:[#allocation2 + $0x30] sm:$0xff] 0.0
          %408 = vst [vmem:[#allocation2 + $0x38] sm:$0xff] 0.0
          %409 = vst [vmem:[#allocation2 + $0x40] sm:$0xff] 0.0
          %410 = vst [vmem:[#allocation2 + $0x48] sm:$0xff] 0.0
          %411 = vst [vmem:[#allocation2 + $0x50] sm:$0xff] 0.0
          %412 = vst [vmem:[#allocation2 + $0x58] sm:$0xff] 0.0
          %413 = vst [vmem:[#allocation2 + $0x60] sm:$0xff] 0.0
          %414 = vst [vmem:[#allocation2 + $0x68] sm:$0xff] 0.0
          %415 = vst [vmem:[#allocation2 + $0x70] sm:$0xff] 0.0
          %416 = vst [vmem:[#allocation2 + $0x78] sm:$0xff] 0.0
        $region81: #{bottleneck_forward.5} parent=72 // pred_fallthru
          _
        %v417 = vld [vmem:[#allocation2] sm:$0xff]
        %v418 = vld [vmem:[#allocation2 + $0x8] sm:$0xff]
        %v419 = vld [vmem:[#allocation2 + $0x10] sm:$0xff]
        %v420 = vld [vmem:[#allocation2 + $0x18] sm:$0xff]
        %v421 = vld [vmem:[#allocation2 + $0x20] sm:$0xff]
        %v422 = vld [vmem:[#allocation2 + $0x28] sm:$0xff]
        %v423 = vld [vmem:[#allocation2 + $0x30] sm:$0xff]
        %v424 = vld [vmem:[#allocation2 + $0x38] sm:$0xff]
        %v425 = vld [vmem:[#allocation2 + $0x40] sm:$0xff]
        %v426 = vld [vmem:[#allocation2 + $0x48] sm:$0xff]
        %v427 = vld [vmem:[#allocation2 + $0x50] sm:$0xff]
        %v428 = vld [vmem:[#allocation2 + $0x58] sm:$0xff]
        %v429 = vld [vmem:[#allocation2 + $0x60] sm:$0xff]
        %v430 = vld [vmem:[#allocation2 + $0x68] sm:$0xff]
        %v431 = vld [vmem:[#allocation2 + $0x70] sm:$0xff]
        %v432 = vld [vmem:[#allocation2 + $0x78] sm:$0xff]
        %v433 = vld [vmem:[%s331] sm:$0xf]
        %v434 = vld [vmem:[%s331 + $0x4] sm:$0xf]
        %v435 = vld [vmem:[%s331 + $0x8] sm:$0xf]
        %v436 = vld [vmem:[%s331 + $0xc] sm:$0xf]
        %v437 = vld [vmem:[%s331 + $0x10] sm:$0xf]
        %v438 = vld [vmem:[%s331 + $0x14] sm:$0xf]
        %v439 = vld [vmem:[%s331 + $0x18] sm:$0xf]
        %v440 = vld [vmem:[%s331 + $0x1c] sm:$0xf]
        %v441 = vld [vmem:[%s331 + $0x20] sm:$0xf]
        %v442 = vld [vmem:[%s331 + $0x24] sm:$0xf]
        %v443 = vld [vmem:[%s331 + $0x28] sm:$0xf]
        %v444 = vld [vmem:[%s331 + $0x2c] sm:$0xf]
        %v445 = vld [vmem:[%s331 + $0x30] sm:$0xf]
        %v446 = vld [vmem:[%s331 + $0x34] sm:$0xf]
        %v447 = vld [vmem:[%s331 + $0x38] sm:$0xf]
        %v448 = vld [vmem:[%s331 + $0x3c] sm:$0xf]
        %v449 = vld [vmem:[%s379] sm:$0xf]
        %v450 = vld [vmem:[%s379 + $0x4] sm:$0xf]
        %v451 = vld [vmem:[%s379 + $0x8] sm:$0xf]
        %v452 = vld [vmem:[%s379 + $0xc] sm:$0xf]
        %v453 = vld [vmem:[%s379 + $0x10] sm:$0xf]
        %v454 = vld [vmem:[%s379 + $0x14] sm:$0xf]
        %v455 = vld [vmem:[%s379 + $0x18] sm:$0xf]
        %v456 = vld [vmem:[%s379 + $0x1c] sm:$0xf]
        %v457 = vld [vmem:[%s379 + $0x20] sm:$0xf]
        %v458 = vld [vmem:[%s379 + $0x24] sm:$0xf]
        %v459 = vld [vmem:[%s379 + $0x28] sm:$0xf]
        %v460 = vld [vmem:[%s379 + $0x2c] sm:$0xf]
        %v461 = vld [vmem:[%s379 + $0x30] sm:$0xf]
        %v462 = vld [vmem:[%s379 + $0x34] sm:$0xf]
        %v463 = vld [vmem:[%s379 + $0x38] sm:$0xf]
        %v464 = vld [vmem:[%s379 + $0x3c] sm:$0xf]
        %v481 = vunpack.c.l.b16 %v433
        %v482 = vunpack.c.l.b16 %v434
        %v483 = vunpack.c.l.b16 %v435
        %v484 = vunpack.c.l.b16 %v436
        %v485 = vunpack.c.l.b16 %v437
        %v486 = vunpack.c.l.b16 %v438
        %v487 = vunpack.c.l.b16 %v439
        %v488 = vunpack.c.l.b16 %v440
        %v489 = vunpack.c.l.b16 %v441
        %v490 = vunpack.c.l.b16 %v442
        %v491 = vunpack.c.l.b16 %v443
        %v492 = vunpack.c.l.b16 %v444
        %v493 = vunpack.c.l.b16 %v445
        %v494 = vunpack.c.l.b16 %v446
        %v495 = vunpack.c.l.b16 %v447
        %v496 = vunpack.c.l.b16 %v448
        %v497 = vpack.c.b16 %v482, %v481
        %v498 = vpack.c.b16 %v484, %v483
        %v499 = vpack.c.b16 %v486, %v485
        %v500 = vpack.c.b16 %v488, %v487
        %v501 = vpack.c.b16 %v490, %v489
        %v502 = vpack.c.b16 %v492, %v491
        %v503 = vpack.c.b16 %v494, %v493
        %v504 = vpack.c.b16 %v496, %v495
        %v529 = vunpack.c.l.b16 %v449
        %v530 = vunpack.c.l.b16 %v450
        %v531 = vunpack.c.l.b16 %v451
        %v532 = vunpack.c.l.b16 %v452
        %v533 = vunpack.c.l.b16 %v453
        %v534 = vunpack.c.l.b16 %v454
        %v535 = vunpack.c.l.b16 %v455
        %v536 = vunpack.c.l.b16 %v456
        %v537 = vunpack.c.l.b16 %v457
        %v538 = vunpack.c.l.b16 %v458
        %v539 = vunpack.c.l.b16 %v459
        %v540 = vunpack.c.l.b16 %v460
        %v541 = vunpack.c.l.b16 %v461
        %v542 = vunpack.c.l.b16 %v462
        %v543 = vunpack.c.l.b16 %v463
        %v544 = vunpack.c.l.b16 %v464
        %v545 = vpack.c.b16 %v530, %v529
        %v546 = vpack.c.b16 %v532, %v531
        %v547 = vpack.c.b16 %v534, %v533
        %v548 = vpack.c.b16 %v536, %v535
        %v549 = vpack.c.b16 %v538, %v537
        %v550 = vpack.c.b16 %v540, %v539
        %v551 = vpack.c.b16 %v542, %v541
        %v552 = vpack.c.b16 %v544, %v543
        %561 = vmatprep.subr.bf16.mxu0 0
        %562 = vmatpush1.bf16.msra.mxu0 %v552
        %563 = vmatprep.subr.bf16.mxu0 0
        %564 = vmatpush1.bf16.msra.mxu0 %v551
        %565 = vmatprep.subr.bf16.mxu0 0
        %566 = vmatpush1.bf16.msra.mxu0 %v550
        %567 = vmatprep.subr.bf16.mxu0 0
        %568 = vmatpush1.bf16.msra.mxu0 %v549
        %569 = vmatprep.subr.bf16.mxu0 0
        %570 = vmatpush1.bf16.msra.mxu0 %v548
        %571 = vmatprep.subr.bf16.mxu0 0
        %572 = vmatpush1.bf16.msra.mxu0 %v547
        %573 = vmatprep.subr.bf16.mxu0 0
        %574 = vmatpush1.bf16.msra.mxu0 %v546
        %575 = vmatprep.subr.bf16.mxu0 0
        %576 = vmatpush1.bf16.msra.mxu0 %v545
        %577 = vmatprep.subr.bf16.mxu0 0
        %578 = vmatpush2.bf16.msra.mxu0 0
        %579 = vmatprep.subr.bf16.mxu0 0
        %580 = vmatpush2.bf16.msra.mxu0 0
        %581 = vmatprep.subr.bf16.mxu0 0
        %582 = vmatpush2.bf16.msra.mxu0 0
        %583 = vmatprep.subr.bf16.mxu0 0
        %584 = vmatpush2.bf16.msra.mxu0 0
        %585 = vmatprep.subr.bf16.mxu0 0
        %586 = vmatpush2.bf16.msra.mxu0 0
        %587 = vmatprep.subr.bf16.mxu0 0
        %588 = vmatpush2.bf16.msra.mxu0 0
        %589 = vmatprep.subr.bf16.mxu0 0
        %590 = vmatpush2.bf16.msra.mxu0 0
        %591 = vmatprep.subr.bf16.mxu0 0
        %592 = vmatpush2.bf16.msra.mxu0 0
        %593 = vmatprep.mubr.bf16.mxu0 0
        %594 = vmatmul.mubr.bf16.gmra.mxu0 %v497
        %v595 = vpop.f32.mrf.mxu0
        %v596 = vadd.f32 0.0, %v595
        %v597 = vpop.f32.mrf.mxu0
        %v598 = vpop.f32.mrf.mxu0
        %v599 = vadd.f32 0.0, %v598
        %v600 = vpop.f32.mrf.mxu0
        %601 = vmatprep.mubr.bf16.mxu0 0
        %602 = vmatmul.mubr.bf16.gmra.mxu0 %v498
        %v603 = vpop.f32.mrf.mxu0
        %v604 = vadd.f32 0.0, %v603
        %v605 = vpop.f32.mrf.mxu0
        %v606 = vpop.f32.mrf.mxu0
        %v607 = vadd.f32 0.0, %v606
        %v608 = vpop.f32.mrf.mxu0
        %609 = vmatprep.mubr.bf16.mxu0 0
        %610 = vmatmul.mubr.bf16.gmra.mxu0 %v499
        %v611 = vpop.f32.mrf.mxu0
        %v612 = vadd.f32 0.0, %v611
        %v613 = vpop.f32.mrf.mxu0
        %v614 = vpop.f32.mrf.mxu0
        %v615 = vadd.f32 0.0, %v614
        %v616 = vpop.f32.mrf.mxu0
        %617 = vmatprep.mubr.bf16.mxu0 0
        %618 = vmatmul.mubr.bf16.gmra.mxu0 %v500
        %v619 = vpop.f32.mrf.mxu0
        %v620 = vadd.f32 0.0, %v619
        %v621 = vpop.f32.mrf.mxu0
        %v622 = vpop.f32.mrf.mxu0
        %v623 = vadd.f32 0.0, %v622
        %v624 = vpop.f32.mrf.mxu0
        %625 = vmatprep.mubr.bf16.mxu0 0
        %626 = vmatmul.mubr.bf16.gmra.mxu0 %v501
        %v627 = vpop.f32.mrf.mxu0
        %v628 = vadd.f32 0.0, %v627
        %v629 = vpop.f32.mrf.mxu0
        %v630 = vpop.f32.mrf.mxu0
        %v631 = vadd.f32 0.0, %v630
        %v632 = vpop.f32.mrf.mxu0
        %633 = vmatprep.mubr.bf16.mxu0 0
        %634 = vmatmul.mubr.bf16.gmra.mxu0 %v502
        %v635 = vpop.f32.mrf.mxu0
        %v636 = vadd.f32 0.0, %v635
        %v637 = vpop.f32.mrf.mxu0
        %v638 = vpop.f32.mrf.mxu0
        %v639 = vadd.f32 0.0, %v638
        %v640 = vpop.f32.mrf.mxu0
        %641 = vmatprep.mubr.bf16.mxu0 0
        %642 = vmatmul.mubr.bf16.gmra.mxu0 %v503
        %v643 = vpop.f32.mrf.mxu0
        %v644 = vadd.f32 0.0, %v643
        %v645 = vpop.f32.mrf.mxu0
        %v646 = vpop.f32.mrf.mxu0
        %v647 = vadd.f32 0.0, %v646
        %v648 = vpop.f32.mrf.mxu0
        %649 = vmatprep.mubr.bf16.mxu0 0
        %650 = vmatmul.mubr.bf16.gmra.mxu0 %v504
        %v651 = vpop.f32.mrf.mxu0
        %v652 = vadd.f32 0.0, %v651
        %v653 = vpop.f32.mrf.mxu0
        %v654 = vpop.f32.mrf.mxu0
        %v655 = vadd.f32 0.0, %v654
        %v656 = vpop.f32.mrf.mxu0
        %657 = vdwg.mxu0
        %v658 = vadd.f32 %v417, %v596
        %v659 = vadd.f32 %v418, %v599
        %v660 = vadd.f32 %v419, %v604
        %v661 = vadd.f32 %v420, %v607
        %v662 = vadd.f32 %v421, %v612
        %v663 = vadd.f32 %v422, %v615
        %v664 = vadd.f32 %v423, %v620
        %v665 = vadd.f32 %v424, %v623
        %v666 = vadd.f32 %v425, %v628
        %v667 = vadd.f32 %v426, %v631
        %v668 = vadd.f32 %v427, %v636
        %v669 = vadd.f32 %v428, %v639
        %v670 = vadd.f32 %v429, %v644
        %v671 = vadd.f32 %v430, %v647
        %v672 = vadd.f32 %v431, %v652
        %v673 = vadd.f32 %v432, %v655
        %674 = vst [vmem:[#allocation2] sm:$0xff] %v658
        %675 = vst [vmem:[#allocation2 + $0x8] sm:$0xff] %v659
        %676 = vst [vmem:[#allocation2 + $0x10] sm:$0xff] %v660
        %677 = vst [vmem:[#allocation2 + $0x18] sm:$0xff] %v661
        %678 = vst [vmem:[#allocation2 + $0x20] sm:$0xff] %v662
        %679 = vst [vmem:[#allocation2 + $0x28] sm:$0xff] %v663
        %680 = vst [vmem:[#allocation2 + $0x30] sm:$0xff] %v664
        %681 = vst [vmem:[#allocation2 + $0x38] sm:$0xff] %v665
        %682 = vst [vmem:[#allocation2 + $0x40] sm:$0xff] %v666
        %683 = vst [vmem:[#allocation2 + $0x48] sm:$0xff] %v667
        %684 = vst [vmem:[#allocation2 + $0x50] sm:$0xff] %v668
        %685 = vst [vmem:[#allocation2 + $0x58] sm:$0xff] %v669
        %686 = vst [vmem:[#allocation2 + $0x60] sm:$0xff] %v670
        %687 = vst [vmem:[#allocation2 + $0x68] sm:$0xff] %v671
        %688 = vst [vmem:[#allocation2 + $0x70] sm:$0xff] %v672
        %689 = vst [vmem:[#allocation2 + $0x78] sm:$0xff] %v673
        %p690 = scmp.eq.s32.totalorder %s22, 2
        // Predicated region
        $region82: #{bottleneck_forward.5} parent=72 // pred_check
          %p691 = pneg %p690
        $region83: #{bottleneck_forward.5} parent=72 // pred_check_branch
          %693 = sbr.rel (%p691) target = $region85
        $region84: #{bottleneck_forward.5} parent=72 // pred_region
          %v694 = vld [vmem:[#allocation2] sm:$0xff]
          %v695 = vld [vmem:[#allocation2 + $0x8] sm:$0xff]
          %v696 = vld [vmem:[#allocation2 + $0x10] sm:$0xff]
          %v697 = vld [vmem:[#allocation2 + $0x18] sm:$0xff]
          %v698 = vld [vmem:[#allocation2 + $0x20] sm:$0xff]
          %v699 = vld [vmem:[#allocation2 + $0x28] sm:$0xff]
          %v700 = vld [vmem:[#allocation2 + $0x30] sm:$0xff]
          %v701 = vld [vmem:[#allocation2 + $0x38] sm:$0xff]
          %v702 = vld [vmem:[#allocation2 + $0x40] sm:$0xff]
          %v703 = vld [vmem:[#allocation2 + $0x48] sm:$0xff]
          %v704 = vld [vmem:[#allocation2 + $0x50] sm:$0xff]
          %v705 = vld [vmem:[#allocation2 + $0x58] sm:$0xff]
          %v706 = vld [vmem:[#allocation2 + $0x60] sm:$0xff]
          %v707 = vld [vmem:[#allocation2 + $0x68] sm:$0xff]
          %v708 = vld [vmem:[#allocation2 + $0x70] sm:$0xff]
          %v709 = vld [vmem:[#allocation2 + $0x78] sm:$0xff]
          %v710 = vld [vmem:[%s383] sm:$0x1]
          %v712 = vlaneseq
          %v713 = vshrl.u32 %v712, 7
          %v714 = vsub.s32 0, %v713
          %v715 = vrot.slane %v710, %v714
          %v717 = vmul.f32 %v694, %v715
          %v718 = vmul.f32 %v695, %v715
          %v719 = vmul.f32 %v696, %v715
          %v720 = vmul.f32 %v697, %v715
          %v721 = vmul.f32 %v698, %v715
          %v722 = vmul.f32 %v699, %v715
          %v723 = vmul.f32 %v700, %v715
          %v724 = vmul.f32 %v701, %v715
          %v725 = vmul.f32 %v702, %v715
          %v726 = vmul.f32 %v703, %v715
          %v727 = vmul.f32 %v704, %v715
          %v728 = vmul.f32 %v705, %v715
          %v729 = vmul.f32 %v706, %v715
          %v730 = vmul.f32 %v707, %v715
          %v731 = vmul.f32 %v708, %v715
          %v732 = vmul.f32 %v709, %v715
          %v733 = vld [vmem:[%s386] sm:$0x1]
          %v735 = vlaneseq
          %v736 = vshrl.u32 %v735, 7
          %v737 = vsub.s32 0, %v736
          %v738 = vrot.slane %v733, %v737
          %v740 = vadd.f32 %v717, %v738
          %v741 = vadd.f32 %v718, %v738
          %v742 = vadd.f32 %v719, %v738
          %v743 = vadd.f32 %v720, %v738
          %v744 = vadd.f32 %v721, %v738
          %v745 = vadd.f32 %v722, %v738
          %v746 = vadd.f32 %v723, %v738
          %v747 = vadd.f32 %v724, %v738
          %v748 = vadd.f32 %v725, %v738
          %v749 = vadd.f32 %v726, %v738
          %v750 = vadd.f32 %v727, %v738
          %v751 = vadd.f32 %v728, %v738
          %v752 = vadd.f32 %v729, %v738
          %v753 = vadd.f32 %v730, %v738
          %v754 = vadd.f32 %v731, %v738
          %v755 = vadd.f32 %v732, %v738
          %v756 = vmax.f32 %v740, 0.0
          %v757 = vmax.f32 %v741, 0.0
          %v758 = vmax.f32 %v742, 0.0
          %v759 = vmax.f32 %v743, 0.0
          %v760 = vmax.f32 %v744, 0.0
          %v761 = vmax.f32 %v745, 0.0
          %v762 = vmax.f32 %v746, 0.0
          %v763 = vmax.f32 %v747, 0.0
          %v764 = vmax.f32 %v748, 0.0
          %v765 = vmax.f32 %v749, 0.0
          %v766 = vmax.f32 %v750, 0.0
          %v767 = vmax.f32 %v751, 0.0
          %v768 = vmax.f32 %v752, 0.0
          %v769 = vmax.f32 %v753, 0.0
          %v770 = vmax.f32 %v754, 0.0
          %v771 = vmax.f32 %v755, 0.0
          %772 = vst [vmem:[%s394] sm:$0xff] %v756
          %773 = vst [vmem:[%s394 + $0x8] sm:$0xff] %v757
          %774 = vst [vmem:[%s394 + $0x10] sm:$0xff] %v758
          %775 = vst [vmem:[%s394 + $0x18] sm:$0xff] %v759
          %776 = vst [vmem:[%s394 + $0x20] sm:$0xff] %v760
          %777 = vst [vmem:[%s394 + $0x28] sm:$0xff] %v761
          %778 = vst [vmem:[%s394 + $0x30] sm:$0xff] %v762
          %779 = vst [vmem:[%s394 + $0x38] sm:$0xff] %v763
          %780 = vst [vmem:[%s394 + $0x40] sm:$0xff] %v764
          %781 = vst [vmem:[%s394 + $0x48] sm:$0xff] %v765
          %782 = vst [vmem:[%s394 + $0x50] sm:$0xff] %v766
          %783 = vst [vmem:[%s394 + $0x58] sm:$0xff] %v767
          %784 = vst [vmem:[%s394 + $0x60] sm:$0xff] %v768
          %785 = vst [vmem:[%s394 + $0x68] sm:$0xff] %v769
          %786 = vst [vmem:[%s394 + $0x70] sm:$0xff] %v770
          %787 = vst [vmem:[%s394 + $0x78] sm:$0xff] %v771
        $region85: #{bottleneck_forward.5} parent=72 // pred_fallthru
          _
        %s788 = smul.u32 16, %s20
        %p789 = scmp.lt.s32.totalorder %s788, 15
        %s790 = scalar_select %p789, %s788, 15
        %p791 = scmp.lt.s32.totalorder %s21, 0
        %s792 = scalar_select %p791, %s21, 0
        %s793 = sadd.s32 %s792, %s790
        %s794 = smul.addr %s793, 8
        %s795 = scalar_lea.vmem %s4, %s794
        // Predicated region
        $region86: #{bottleneck_forward.5} parent=72 // pred_check
          %p796 = pneg %p162
        $region87: #{bottleneck_forward.5} parent=72 // pred_check_branch
          %798 = sbr.rel (%p796) target = $region89
        $region88: #{bottleneck_forward.5} parent=72 // pred_region
          %s799 = smul.u32 16, %s20
        $region89: #{bottleneck_forward.5} parent=72 // pred_fallthru
          _
        // Predicated region
        $region90: #{bottleneck_forward.5} parent=72 // pred_check
          %p800 = pneg %p162
        $region91: #{bottleneck_forward.5} parent=72 // pred_check_branch
          %802 = sbr.rel (%p800) target = $region93
        $region92: #{bottleneck_forward.5} parent=72 // pred_region
          %s803 = smul.u32 16, %s20
          %p804 = scmp.lt.s32.totalorder %s803, 15
          %s805 = scalar_select %p804, %s803, 15
          %p806 = scmp.lt.s32.totalorder %s21, 0
          %s807 = scalar_select %p806, %s21, 0
          %s808 = sadd.s32 %s807, %s805
          %s809 = smul.addr %s808, 8
          %s810 = scalar_lea.vmem %s4, %s809
        $region93: #{bottleneck_forward.5} parent=72 // pred_fallthru
          _
      $region73: #{bottleneck_forward.5} parent=5 // pred_fallthru
        _
      %p811 = scmp.le.s32.totalorder 2, %s10
      // Predicated region
      $region94: #{bottleneck_forward.5} parent=5 // pred_check
        %p812 = pneg %p811
      $region95: #{bottleneck_forward.5} parent=5 // pred_check_branch
        %814 = sbr.rel (%p812) target = $region97
      $region96: #{bottleneck_forward.5} parent=5 // pred_region
        %s815 = ssub.s32 %s10, 2
      $region97: #{bottleneck_forward.5} parent=5 // pred_fallthru
        _
    $region6: #{bottleneck_forward.5} parent=1 // loop_footer
      %s14 = sadd.s32 1, %s10
    $region7: #{bottleneck_forward.5} parent=1 // loop_footer_branch
      %9 = sbr.rel target = $region3
    $region8: #{bottleneck_forward.5} parent=1 // loop_exit
      _

// kernel: bottleneck_forward.7
$region0: #{bottleneck_forward.7}
  #allocation0 [shape = 'u32[]', space=smem, size = 0x4, offset = 0x4, fixed_abs, tag = 'smem constant byte address 0x4 - core index']
  #allocation1 [shape = 'u32[144,128]{1,0:T(1,128)}', space=vmem, size = 0x12000, scoped, tag = 'internal scratch']
  #allocation2 [shape = 'f32[128,128]{1,0:T(8,128)}', space=vmem, size = 0x10000, scoped, tag = 'scratch operand']
  %s0 = inlined_call_operand.vmem [shape: bf16[128,128], index: 0, kind: input, shape index: {}]
  %s1 = inlined_call_operand.vmem [shape: bf16[128,128], index: 1, kind: input, shape index: {}]
  %s2 = inlined_call_operand.vmem [shape: f32[1,128], index: 2, kind: input, shape index: {}]
  %s3 = inlined_call_operand.vmem [shape: f32[1,128], index: 3, kind: input, shape index: {}]
  %s4 = inlined_call_operand.vmem [shape: f32[128,128], index: 4, kind: input, shape index: {}]
  %s5 = inlined_call_operand.hbm [shape: f32[128,128], index: 5, kind: output, shape index: {}]
  %s6 = sld [smem:[#allocation0]]
  $region38: #{bottleneck_forward.7} parent=0
    _
  %s8 = ssub.s32 1, %s6
  %s9 = scalar_select 0, %s8, %s6
  $region1: #{bottleneck_forward.7} parent=0
    #allocation3 [shape = 'u8[65536]{0}', space=vmem, size = 0x10000, scoped, tag = 'output window, operand 0, single buffered']
    #allocation4 [shape = 's32[1]{0}', space=sflag, size = 0x4, scoped, tag = 'scoped memory for bottleneck_forward.7']
    %10 = vsyncpa [#allocation4], 0
    // Predicated region
    $region2: #{bottleneck_forward.7} parent=1 // pred_check
      _
    $region3: #{bottleneck_forward.7} parent=1 // pred_check_branch
      %12 = sbr.rel (0) target = $region5
    $region4: #{bottleneck_forward.7} parent=1 // pred_region
      _
    $region5: #{bottleneck_forward.7} parent=1 // pred_fallthru
      _
    // Predicated region
    $region6: #{bottleneck_forward.7} parent=1 // pred_check
      _
    $region7: #{bottleneck_forward.7} parent=1 // pred_check_branch
      %14 = sbr.rel (0) target = $region9
    $region8: #{bottleneck_forward.7} parent=1 // pred_region
      _
    $region9: #{bottleneck_forward.7} parent=1 // pred_fallthru
      _
    // Predicated region
    $region10: #{bottleneck_forward.7} parent=1 // pred_check
      _
    $region11: #{bottleneck_forward.7} parent=1 // pred_check_branch
      %16 = sbr.rel (0) target = $region13
    $region12: #{bottleneck_forward.7} parent=1 // pred_region
      _
    $region13: #{bottleneck_forward.7} parent=1 // pred_fallthru
      _
    // Predicated region
    $region14: #{bottleneck_forward.7} parent=1 // pred_check
      _
    $region15: #{bottleneck_forward.7} parent=1 // pred_check_branch
      %18 = sbr.rel (0) target = $region17
    $region16: #{bottleneck_forward.7} parent=1 // pred_region
      _
    $region17: #{bottleneck_forward.7} parent=1 // pred_fallthru
      _
    // Predicated region
    $region18: #{bottleneck_forward.7} parent=1 // pred_check
      _
    $region19: #{bottleneck_forward.7} parent=1 // pred_check_branch
      %20 = sbr.rel (0) target = $region21
    $region20: #{bottleneck_forward.7} parent=1 // pred_region
      _
    $region21: #{bottleneck_forward.7} parent=1 // pred_fallthru
      _
    %p22 = scmp.eq.s32.totalorder 0, 0
    // Predicated region
    $region22: #{bottleneck_forward.7} parent=1 // pred_check
      %p23 = pneg %p22
    $region23: #{bottleneck_forward.7} parent=1 // pred_check_branch
      %25 = sbr.rel (%p23) target = $region25
    $region24: #{bottleneck_forward.7} parent=1 // pred_region
      %26 = vst [vmem:[#allocation2] sm:$0xff] 0.0
      %27 = vst [vmem:[#allocation2 + $0x8] sm:$0xff] 0.0
      %28 = vst [vmem:[#allocation2 + $0x10] sm:$0xff] 0.0
      %29 = vst [vmem:[#allocation2 + $0x18] sm:$0xff] 0.0
      %30 = vst [vmem:[#allocation2 + $0x20] sm:$0xff] 0.0
      %31 = vst [vmem:[#allocation2 + $0x28] sm:$0xff] 0.0
      %32 = vst [vmem:[#allocation2 + $0x30] sm:$0xff] 0.0
      %33 = vst [vmem:[#allocation2 + $0x38] sm:$0xff] 0.0
      %34 = vst [vmem:[#allocation2 + $0x40] sm:$0xff] 0.0
      %35 = vst [vmem:[#allocation2 + $0x48] sm:$0xff] 0.0
      %36 = vst [vmem:[#allocation2 + $0x50] sm:$0xff] 0.0
      %37 = vst [vmem:[#allocation2 + $0x58] sm:$0xff] 0.0
      %38 = vst [vmem:[#allocation2 + $0x60] sm:$0xff] 0.0
      %39 = vst [vmem:[#allocation2 + $0x68] sm:$0xff] 0.0
      %40 = vst [vmem:[#allocation2 + $0x70] sm:$0xff] 0.0
      %41 = vst [vmem:[#allocation2 + $0x78] sm:$0xff] 0.0
    $region25: #{bottleneck_forward.7} parent=1 // pred_fallthru
      _
    %v42 = vld [vmem:[#allocation2] sm:$0xff]
    %v43 = vld [vmem:[#allocation2 + $0x8] sm:$0xff]
    %v44 = vld [vmem:[#allocation2 + $0x10] sm:$0xff]
    %v45 = vld [vmem:[#allocation2 + $0x18] sm:$0xff]
    %v46 = vld [vmem:[#allocation2 + $0x20] sm:$0xff]
    %v47 = vld [vmem:[#allocation2 + $0x28] sm:$0xff]
    %v48 = vld [vmem:[#allocation2 + $0x30] sm:$0xff]
    %v49 = vld [vmem:[#allocation2 + $0x38] sm:$0xff]
    %v50 = vld [vmem:[#allocation2 + $0x40] sm:$0xff]
    %v51 = vld [vmem:[#allocation2 + $0x48] sm:$0xff]
    %v52 = vld [vmem:[#allocation2 + $0x50] sm:$0xff]
    %v53 = vld [vmem:[#allocation2 + $0x58] sm:$0xff]
    %v54 = vld [vmem:[#allocation2 + $0x60] sm:$0xff]
    %v55 = vld [vmem:[#allocation2 + $0x68] sm:$0xff]
    %v56 = vld [vmem:[#allocation2 + $0x70] sm:$0xff]
    %v57 = vld [vmem:[#allocation2 + $0x78] sm:$0xff]
    %v58 = vld [vmem:[%s0] sm:$0xf]
    %v59 = vld [vmem:[%s0 + $0x4] sm:$0xf]
    %v60 = vld [vmem:[%s0 + $0x8] sm:$0xf]
    %v61 = vld [vmem:[%s0 + $0xc] sm:$0xf]
    %v62 = vld [vmem:[%s0 + $0x10] sm:$0xf]
    %v63 = vld [vmem:[%s0 + $0x14] sm:$0xf]
    %v64 = vld [vmem:[%s0 + $0x18] sm:$0xf]
    %v65 = vld [vmem:[%s0 + $0x1c] sm:$0xf]
    %v66 = vld [vmem:[%s0 + $0x20] sm:$0xf]
    %v67 = vld [vmem:[%s0 + $0x24] sm:$0xf]
    %v68 = vld [vmem:[%s0 + $0x28] sm:$0xf]
    %v69 = vld [vmem:[%s0 + $0x2c] sm:$0xf]
    %v70 = vld [vmem:[%s0 + $0x30] sm:$0xf]
    %v71 = vld [vmem:[%s0 + $0x34] sm:$0xf]
    %v72 = vld [vmem:[%s0 + $0x38] sm:$0xf]
    %v73 = vld [vmem:[%s0 + $0x3c] sm:$0xf]
    %v74 = vld [vmem:[%s1] sm:$0xf]
    %v75 = vld [vmem:[%s1 + $0x4] sm:$0xf]
    %v76 = vld [vmem:[%s1 + $0x8] sm:$0xf]
    %v77 = vld [vmem:[%s1 + $0xc] sm:$0xf]
    %v78 = vld [vmem:[%s1 + $0x10] sm:$0xf]
    %v79 = vld [vmem:[%s1 + $0x14] sm:$0xf]
    %v80 = vld [vmem:[%s1 + $0x18] sm:$0xf]
    %v81 = vld [vmem:[%s1 + $0x1c] sm:$0xf]
    %v82 = vld [vmem:[%s1 + $0x20] sm:$0xf]
    %v83 = vld [vmem:[%s1 + $0x24] sm:$0xf]
    %v84 = vld [vmem:[%s1 + $0x28] sm:$0xf]
    %v85 = vld [vmem:[%s1 + $0x2c] sm:$0xf]
    %v86 = vld [vmem:[%s1 + $0x30] sm:$0xf]
    %v87 = vld [vmem:[%s1 + $0x34] sm:$0xf]
    %v88 = vld [vmem:[%s1 + $0x38] sm:$0xf]
    %v89 = vld [vmem:[%s1 + $0x3c] sm:$0xf]
    %v106 = vunpack.c.l.b16 %v58
    %v107 = vunpack.c.l.b16 %v59
    %v108 = vunpack.c.l.b16 %v60
    %v109 = vunpack.c.l.b16 %v61
    %v110 = vunpack.c.l.b16 %v62
    %v111 = vunpack.c.l.b16 %v63
    %v112 = vunpack.c.l.b16 %v64
    %v113 = vunpack.c.l.b16 %v65
    %v114 = vunpack.c.l.b16 %v66
    %v115 = vunpack.c.l.b16 %v67
    %v116 = vunpack.c.l.b16 %v68
    %v117 = vunpack.c.l.b16 %v69
    %v118 = vunpack.c.l.b16 %v70
    %v119 = vunpack.c.l.b16 %v71
    %v120 = vunpack.c.l.b16 %v72
    %v121 = vunpack.c.l.b16 %v73
    %v122 = vpack.c.b16 %v107, %v106
    %v123 = vpack.c.b16 %v109, %v108
    %v124 = vpack.c.b16 %v111, %v110
    %v125 = vpack.c.b16 %v113, %v112
    %v126 = vpack.c.b16 %v115, %v114
    %v127 = vpack.c.b16 %v117, %v116
    %v128 = vpack.c.b16 %v119, %v118
    %v129 = vpack.c.b16 %v121, %v120
    %v154 = vunpack.c.l.b16 %v74
    %v155 = vunpack.c.l.b16 %v75
    %v156 = vunpack.c.l.b16 %v76
    %v157 = vunpack.c.l.b16 %v77
    %v158 = vunpack.c.l.b16 %v78
    %v159 = vunpack.c.l.b16 %v79
    %v160 = vunpack.c.l.b16 %v80
    %v161 = vunpack.c.l.b16 %v81
    %v162 = vunpack.c.l.b16 %v82
    %v163 = vunpack.c.l.b16 %v83
    %v164 = vunpack.c.l.b16 %v84
    %v165 = vunpack.c.l.b16 %v85
    %v166 = vunpack.c.l.b16 %v86
    %v167 = vunpack.c.l.b16 %v87
    %v168 = vunpack.c.l.b16 %v88
    %v169 = vunpack.c.l.b16 %v89
    %v170 = vpack.c.b16 %v155, %v154
    %v171 = vpack.c.b16 %v157, %v156
    %v172 = vpack.c.b16 %v159, %v158
    %v173 = vpack.c.b16 %v161, %v160
    %v174 = vpack.c.b16 %v163, %v162
    %v175 = vpack.c.b16 %v165, %v164
    %v176 = vpack.c.b16 %v167, %v166
    %v177 = vpack.c.b16 %v169, %v168
    %186 = vmatprep.subr.bf16.mxu0 0
    %187 = vmatpush1.bf16.msra.mxu0 %v177
    %188 = vmatprep.subr.bf16.mxu0 0
    %189 = vmatpush1.bf16.msra.mxu0 %v176
    %190 = vmatprep.subr.bf16.mxu0 0
    %191 = vmatpush1.bf16.msra.mxu0 %v175
    %192 = vmatprep.subr.bf16.mxu0 0
    %193 = vmatpush1.bf16.msra.mxu0 %v174
    %194 = vmatprep.subr.bf16.mxu0 0
    %195 = vmatpush1.bf16.msra.mxu0 %v173
    %196 = vmatprep.subr.bf16.mxu0 0
    %197 = vmatpush1.bf16.msra.mxu0 %v172
    %198 = vmatprep.subr.bf16.mxu0 0
    %199 = vmatpush1.bf16.msra.mxu0 %v171
    %200 = vmatprep.subr.bf16.mxu0 0
    %201 = vmatpush1.bf16.msra.mxu0 %v170
    %202 = vmatprep.subr.bf16.mxu0 0
    %203 = vmatpush2.bf16.msra.mxu0 0
    %204 = vmatprep.subr.bf16.mxu0 0
    %205 = vmatpush2.bf16.msra.mxu0 0
    %206 = vmatprep.subr.bf16.mxu0 0
    %207 = vmatpush2.bf16.msra.mxu0 0
    %208 = vmatprep.subr.bf16.mxu0 0
    %209 = vmatpush2.bf16.msra.mxu0 0
    %210 = vmatprep.subr.bf16.mxu0 0
    %211 = vmatpush2.bf16.msra.mxu0 0
    %212 = vmatprep.subr.bf16.mxu0 0
    %213 = vmatpush2.bf16.msra.mxu0 0
    %214 = vmatprep.subr.bf16.mxu0 0
    %215 = vmatpush2.bf16.msra.mxu0 0
    %216 = vmatprep.subr.bf16.mxu0 0
    %217 = vmatpush2.bf16.msra.mxu0 0
    %218 = vmatprep.mubr.bf16.mxu0 0
    %219 = vmatmul.mubr.bf16.gmra.mxu0 %v122
    %v220 = vpop.f32.mrf.mxu0
    %v221 = vadd.f32 0.0, %v220
    %v222 = vpop.f32.mrf.mxu0
    %v223 = vpop.f32.mrf.mxu0
    %v224 = vadd.f32 0.0, %v223
    %v225 = vpop.f32.mrf.mxu0
    %226 = vmatprep.mubr.bf16.mxu0 0
    %227 = vmatmul.mubr.bf16.gmra.mxu0 %v123
    %v228 = vpop.f32.mrf.mxu0
    %v229 = vadd.f32 0.0, %v228
    %v230 = vpop.f32.mrf.mxu0
    %v231 = vpop.f32.mrf.mxu0
    %v232 = vadd.f32 0.0, %v231
    %v233 = vpop.f32.mrf.mxu0
    %234 = vmatprep.mubr.bf16.mxu0 0
    %235 = vmatmul.mubr.bf16.gmra.mxu0 %v124
    %v236 = vpop.f32.mrf.mxu0
    %v237 = vadd.f32 0.0, %v236
    %v238 = vpop.f32.mrf.mxu0
    %v239 = vpop.f32.mrf.mxu0
    %v240 = vadd.f32 0.0, %v239
    %v241 = vpop.f32.mrf.mxu0
    %242 = vmatprep.mubr.bf16.mxu0 0
    %243 = vmatmul.mubr.bf16.gmra.mxu0 %v125
    %v244 = vpop.f32.mrf.mxu0
    %v245 = vadd.f32 0.0, %v244
    %v246 = vpop.f32.mrf.mxu0
    %v247 = vpop.f32.mrf.mxu0
    %v248 = vadd.f32 0.0, %v247
    %v249 = vpop.f32.mrf.mxu0
    %250 = vmatprep.mubr.bf16.mxu0 0
    %251 = vmatmul.mubr.bf16.gmra.mxu0 %v126
    %v252 = vpop.f32.mrf.mxu0
    %v253 = vadd.f32 0.0, %v252
    %v254 = vpop.f32.mrf.mxu0
    %v255 = vpop.f32.mrf.mxu0
    %v256 = vadd.f32 0.0, %v255
    %v257 = vpop.f32.mrf.mxu0
    %258 = vmatprep.mubr.bf16.mxu0 0
    %259 = vmatmul.mubr.bf16.gmra.mxu0 %v127
    %v260 = vpop.f32.mrf.mxu0
    %v261 = vadd.f32 0.0, %v260
    %v262 = vpop.f32.mrf.mxu0
    %v263 = vpop.f32.mrf.mxu0
    %v264 = vadd.f32 0.0, %v263
    %v265 = vpop.f32.mrf.mxu0
    %266 = vmatprep.mubr.bf16.mxu0 0
    %267 = vmatmul.mubr.bf16.gmra.mxu0 %v128
    %v268 = vpop.f32.mrf.mxu0
    %v269 = vadd.f32 0.0, %v268
    %v270 = vpop.f32.mrf.mxu0
    %v271 = vpop.f32.mrf.mxu0
    %v272 = vadd.f32 0.0, %v271
    %v273 = vpop.f32.mrf.mxu0
    %274 = vmatprep.mubr.bf16.mxu0 0
    %275 = vmatmul.mubr.bf16.gmra.mxu0 %v129
    %v276 = vpop.f32.mrf.mxu0
    %v277 = vadd.f32 0.0, %v276
    %v278 = vpop.f32.mrf.mxu0
    %v279 = vpop.f32.mrf.mxu0
    %v280 = vadd.f32 0.0, %v279
    %v281 = vpop.f32.mrf.mxu0
    %282 = vdwg.mxu0
    %v283 = vadd.f32 %v42, %v221
    %v284 = vadd.f32 %v43, %v224
    %v285 = vadd.f32 %v44, %v229
    %v286 = vadd.f32 %v45, %v232
    %v287 = vadd.f32 %v46, %v237
    %v288 = vadd.f32 %v47, %v240
    %v289 = vadd.f32 %v48, %v245
    %v290 = vadd.f32 %v49, %v248
    %v291 = vadd.f32 %v50, %v253
    %v292 = vadd.f32 %v51, %v256
    %v293 = vadd.f32 %v52, %v261
    %v294 = vadd.f32 %v53, %v264
    %v295 = vadd.f32 %v54, %v269
    %v296 = vadd.f32 %v55, %v272
    %v297 = vadd.f32 %v56, %v277
    %v298 = vadd.f32 %v57, %v280
    %299 = vst [vmem:[#allocation2] sm:$0xff] %v283
    %300 = vst [vmem:[#allocation2 + $0x8] sm:$0xff] %v284
    %301 = vst [vmem:[#allocation2 + $0x10] sm:$0xff] %v285
    %302 = vst [vmem:[#allocation2 + $0x18] sm:$0xff] %v286
    %303 = vst [vmem:[#allocation2 + $0x20] sm:$0xff] %v287
    %304 = vst [vmem:[#allocation2 + $0x28] sm:$0xff] %v288
    %305 = vst [vmem:[#allocation2 + $0x30] sm:$0xff] %v289
    %306 = vst [vmem:[#allocation2 + $0x38] sm:$0xff] %v290
    %307 = vst [vmem:[#allocation2 + $0x40] sm:$0xff] %v291
    %308 = vst [vmem:[#allocation2 + $0x48] sm:$0xff] %v292
    %309 = vst [vmem:[#allocation2 + $0x50] sm:$0xff] %v293
    %310 = vst [vmem:[#allocation2 + $0x58] sm:$0xff] %v294
    %311 = vst [vmem:[#allocation2 + $0x60] sm:$0xff] %v295
    %312 = vst [vmem:[#allocation2 + $0x68] sm:$0xff] %v296
    %313 = vst [vmem:[#allocation2 + $0x70] sm:$0xff] %v297
    %314 = vst [vmem:[#allocation2 + $0x78] sm:$0xff] %v298
    // Predicated region
    $region26: #{bottleneck_forward.7} parent=1 // pred_check
      %p315 = pneg %p22
    $region27: #{bottleneck_forward.7} parent=1 // pred_check_branch
      %317 = sbr.rel (%p315) target = $region29
    $region28: #{bottleneck_forward.7} parent=1 // pred_region
      %v318 = vld [vmem:[#allocation2] sm:$0xff]
      %v319 = vld [vmem:[#allocation2 + $0x8] sm:$0xff]
      %v320 = vld [vmem:[#allocation2 + $0x10] sm:$0xff]
      %v321 = vld [vmem:[#allocation2 + $0x18] sm:$0xff]
      %v322 = vld [vmem:[#allocation2 + $0x20] sm:$0xff]
      %v323 = vld [vmem:[#allocation2 + $0x28] sm:$0xff]
      %v324 = vld [vmem:[#allocation2 + $0x30] sm:$0xff]
      %v325 = vld [vmem:[#allocation2 + $0x38] sm:$0xff]
      %v326 = vld [vmem:[#allocation2 + $0x40] sm:$0xff]
      %v327 = vld [vmem:[#allocation2 + $0x48] sm:$0xff]
      %v328 = vld [vmem:[#allocation2 + $0x50] sm:$0xff]
      %v329 = vld [vmem:[#allocation2 + $0x58] sm:$0xff]
      %v330 = vld [vmem:[#allocation2 + $0x60] sm:$0xff]
      %v331 = vld [vmem:[#allocation2 + $0x68] sm:$0xff]
      %v332 = vld [vmem:[#allocation2 + $0x70] sm:$0xff]
      %v333 = vld [vmem:[#allocation2 + $0x78] sm:$0xff]
      %v334 = vld [vmem:[%s2] sm:$0x1]
      %v336 = vlaneseq
      %v337 = vshrl.u32 %v336, 7
      %v338 = vsub.s32 0, %v337
      %v339 = vrot.slane %v334, %v338
      %v341 = vmul.f32 %v318, %v339
      %v342 = vmul.f32 %v319, %v339
      %v343 = vmul.f32 %v320, %v339
      %v344 = vmul.f32 %v321, %v339
      %v345 = vmul.f32 %v322, %v339
      %v346 = vmul.f32 %v323, %v339
      %v347 = vmul.f32 %v324, %v339
      %v348 = vmul.f32 %v325, %v339
      %v349 = vmul.f32 %v326, %v339
      %v350 = vmul.f32 %v327, %v339
      %v351 = vmul.f32 %v328, %v339
      %v352 = vmul.f32 %v329, %v339
      %v353 = vmul.f32 %v330, %v339
      %v354 = vmul.f32 %v331, %v339
      %v355 = vmul.f32 %v332, %v339
      %v356 = vmul.f32 %v333, %v339
      %v357 = vld [vmem:[%s3] sm:$0x1]
      %v359 = vlaneseq
      %v360 = vshrl.u32 %v359, 7
      %v361 = vsub.s32 0, %v360
      %v362 = vrot.slane %v357, %v361
      %v364 = vadd.f32 %v341, %v362
      %v365 = vadd.f32 %v342, %v362
      %v366 = vadd.f32 %v343, %v362
      %v367 = vadd.f32 %v344, %v362
      %v368 = vadd.f32 %v345, %v362
      %v369 = vadd.f32 %v346, %v362
      %v370 = vadd.f32 %v347, %v362
      %v371 = vadd.f32 %v348, %v362
      %v372 = vadd.f32 %v349, %v362
      %v373 = vadd.f32 %v350, %v362
      %v374 = vadd.f32 %v351, %v362
      %v375 = vadd.f32 %v352, %v362
      %v376 = vadd.f32 %v353, %v362
      %v377 = vadd.f32 %v354, %v362
      %v378 = vadd.f32 %v355, %v362
      %v379 = vadd.f32 %v356, %v362
      %v380 = vld [vmem:[%s4] sm:$0xff]
      %v381 = vld [vmem:[%s4 + $0x8] sm:$0xff]
      %v382 = vld [vmem:[%s4 + $0x10] sm:$0xff]
      %v383 = vld [vmem:[%s4 + $0x18] sm:$0xff]
      %v384 = vld [vmem:[%s4 + $0x20] sm:$0xff]
      %v385 = vld [vmem:[%s4 + $0x28] sm:$0xff]
      %v386 = vld [vmem:[%s4 + $0x30] sm:$0xff]
      %v387 = vld [vmem:[%s4 + $0x38] sm:$0xff]
      %v388 = vld [vmem:[%s4 + $0x40] sm:$0xff]
      %v389 = vld [vmem:[%s4 + $0x48] sm:$0xff]
      %v390 = vld [vmem:[%s4 + $0x50] sm:$0xff]
      %v391 = vld [vmem:[%s4 + $0x58] sm:$0xff]
      %v392 = vld [vmem:[%s4 + $0x60] sm:$0xff]
      %v393 = vld [vmem:[%s4 + $0x68] sm:$0xff]
      %v394 = vld [vmem:[%s4 + $0x70] sm:$0xff]
      %v395 = vld [vmem:[%s4 + $0x78] sm:$0xff]
      %v396 = vadd.f32 %v364, %v380
      %v397 = vadd.f32 %v365, %v381
      %v398 = vadd.f32 %v366, %v382
      %v399 = vadd.f32 %v367, %v383
      %v400 = vadd.f32 %v368, %v384
      %v401 = vadd.f32 %v369, %v385
      %v402 = vadd.f32 %v370, %v386
      %v403 = vadd.f32 %v371, %v387
      %v404 = vadd.f32 %v372, %v388
      %v405 = vadd.f32 %v373, %v389
      %v406 = vadd.f32 %v374, %v390
      %v407 = vadd.f32 %v375, %v391
      %v408 = vadd.f32 %v376, %v392
      %v409 = vadd.f32 %v377, %v393
      %v410 = vadd.f32 %v378, %v394
      %v411 = vadd.f32 %v379, %v395
      %v412 = vmax.f32 %v396, 0.0
      %v413 = vmax.f32 %v397, 0.0
      %v414 = vmax.f32 %v398, 0.0
      %v415 = vmax.f32 %v399, 0.0
      %v416 = vmax.f32 %v400, 0.0
      %v417 = vmax.f32 %v401, 0.0
      %v418 = vmax.f32 %v402, 0.0
      %v419 = vmax.f32 %v403, 0.0
      %v420 = vmax.f32 %v404, 0.0
      %v421 = vmax.f32 %v405, 0.0
      %v422 = vmax.f32 %v406, 0.0
      %v423 = vmax.f32 %v407, 0.0
      %v424 = vmax.f32 %v408, 0.0
      %v425 = vmax.f32 %v409, 0.0
      %v426 = vmax.f32 %v410, 0.0
      %v427 = vmax.f32 %v411, 0.0
      %428 = vst [vmem:[#allocation3] sm:$0xff] %v412
      %429 = vst [vmem:[#allocation3 + $0x8] sm:$0xff] %v413
      %430 = vst [vmem:[#allocation3 + $0x10] sm:$0xff] %v414
      %431 = vst [vmem:[#allocation3 + $0x18] sm:$0xff] %v415
      %432 = vst [vmem:[#allocation3 + $0x20] sm:$0xff] %v416
      %433 = vst [vmem:[#allocation3 + $0x28] sm:$0xff] %v417
      %434 = vst [vmem:[#allocation3 + $0x30] sm:$0xff] %v418
      %435 = vst [vmem:[#allocation3 + $0x38] sm:$0xff] %v419
      %436 = vst [vmem:[#allocation3 + $0x40] sm:$0xff] %v420
      %437 = vst [vmem:[#allocation3 + $0x48] sm:$0xff] %v421
      %438 = vst [vmem:[#allocation3 + $0x50] sm:$0xff] %v422
      %439 = vst [vmem:[#allocation3 + $0x58] sm:$0xff] %v423
      %440 = vst [vmem:[#allocation3 + $0x60] sm:$0xff] %v424
      %441 = vst [vmem:[#allocation3 + $0x68] sm:$0xff] %v425
      %442 = vst [vmem:[#allocation3 + $0x70] sm:$0xff] %v426
      %443 = vst [vmem:[#allocation3 + $0x78] sm:$0xff] %v427
    $region29: #{bottleneck_forward.7} parent=1 // pred_fallthru
      _
    // Predicated region
    $region30: #{bottleneck_forward.7} parent=1 // pred_check
      _
    $region31: #{bottleneck_forward.7} parent=1 // pred_check_branch
      %445 = sbr.rel (0) target = $region33
    $region32: #{bottleneck_forward.7} parent=1 // pred_region
      %s447 = ssub.s32 2048, 2048
      %448 = vsyncadd [#allocation4], %s447
      %s449 = sshll.u32 [#allocation3], 4
      %s450 = int_to_ptr.vmem [resolvable:$true] %s449
      %455 = dma.vmem_to_hbm [thread:$0]  %s450, 2048, %s5, [#allocation4], 128, 128, 8
    $region33: #{bottleneck_forward.7} parent=1 // pred_fallthru
      _
    // Predicated region
    $region34: #{bottleneck_forward.7} parent=1 // pred_check
      _
    $region35: #{bottleneck_forward.7} parent=1 // pred_check_branch
      %457 = sbr.rel (0) target = $region37
    $region36: #{bottleneck_forward.7} parent=1 // pred_region
      %458 = dma.done [#allocation4], 2048
    $region37: #{bottleneck_forward.7} parent=1 // pred_fallthru
      _
    %459 = vsyncpa [#allocation4], 1

// kernel: bottleneck_forward.6
$region0: #{bottleneck_forward.6}
  #allocation0 [shape = 'u32[]', space=smem, size = 0x4, offset = 0x4, fixed_abs, tag = 'smem constant byte address 0x4 - core index']
  #allocation1 [shape = 'u32[144,128]{1,0:T(1,128)}', space=vmem, size = 0x12000, scoped, tag = 'internal scratch']
  #allocation2 [shape = 'f32[128,128]{1,0:T(8,128)}', space=vmem, size = 0x10000, scoped, tag = 'scratch operand']
  %s0 = inlined_call_operand.vmem [shape: bf16[128,128], index: 0, kind: input, shape index: {}]
  %s1 = inlined_call_operand.vmem [shape: bf16[128,128], index: 1, kind: input, shape index: {}]
  %s2 = inlined_call_operand.vmem [shape: f32[1,128], index: 2, kind: input, shape index: {}]
  %s3 = inlined_call_operand.vmem [shape: f32[1,128], index: 3, kind: input, shape index: {}]
  %s4 = inlined_call_operand.vmem [shape: f32[128,128], index: 4, kind: output, shape index: {}]
  %s5 = sld [smem:[#allocation0]]
  $region34: #{bottleneck_forward.6} parent=0
    _
  %s7 = ssub.s32 1, %s5
  %s8 = scalar_select 0, %s7, %s5
  // Predicated region
  $region2: #{bottleneck_forward.6} parent=0 // pred_check
    _
  $region3: #{bottleneck_forward.6} parent=0 // pred_check_branch
    %10 = sbr.rel (0) target = $region5
  $region4: #{bottleneck_forward.6} parent=0 // pred_region
    _
  $region5: #{bottleneck_forward.6} parent=0 // pred_fallthru
    _
  // Predicated region
  $region6: #{bottleneck_forward.6} parent=0 // pred_check
    _
  $region7: #{bottleneck_forward.6} parent=0 // pred_check_branch
    %12 = sbr.rel (0) target = $region9
  $region8: #{bottleneck_forward.6} parent=0 // pred_region
    _
  $region9: #{bottleneck_forward.6} parent=0 // pred_fallthru
    _
  // Predicated region
  $region10: #{bottleneck_forward.6} parent=0 // pred_check
    _
  $region11: #{bottleneck_forward.6} parent=0 // pred_check_branch
    %14 = sbr.rel (0) target = $region13
  $region12: #{bottleneck_forward.6} parent=0 // pred_region
    _
  $region13: #{bottleneck_forward.6} parent=0 // pred_fallthru
    _
  // Predicated region
  $region14: #{bottleneck_forward.6} parent=0 // pred_check
    _
  $region15: #{bottleneck_forward.6} parent=0 // pred_check_branch
    %16 = sbr.rel (0) target = $region17
  $region16: #{bottleneck_forward.6} parent=0 // pred_region
    _
  $region17: #{bottleneck_forward.6} parent=0 // pred_fallthru
    _
  %p18 = scmp.eq.s32.totalorder 0, 0
  // Predicated region
  $region18: #{bottleneck_forward.6} parent=0 // pred_check
    %p19 = pneg %p18
  $region19: #{bottleneck_forward.6} parent=0 // pred_check_branch
    %21 = sbr.rel (%p19) target = $region21
  $region20: #{bottleneck_forward.6} parent=0 // pred_region
    %22 = vst [vmem:[#allocation2] sm:$0xff] 0.0
    %23 = vst [vmem:[#allocation2 + $0x8] sm:$0xff] 0.0
    %24 = vst [vmem:[#allocation2 + $0x10] sm:$0xff] 0.0
    %25 = vst [vmem:[#allocation2 + $0x18] sm:$0xff] 0.0
    %26 = vst [vmem:[#allocation2 + $0x20] sm:$0xff] 0.0
    %27 = vst [vmem:[#allocation2 + $0x28] sm:$0xff] 0.0
    %28 = vst [vmem:[#allocation2 + $0x30] sm:$0xff] 0.0
    %29 = vst [vmem:[#allocation2 + $0x38] sm:$0xff] 0.0
    %30 = vst [vmem:[#allocation2 + $0x40] sm:$0xff] 0.0
    %31 = vst [vmem:[#allocation2 + $0x48] sm:$0xff] 0.0
    %32 = vst [vmem:[#allocation2 + $0x50] sm:$0xff] 0.0
    %33 = vst [vmem:[#allocation2 + $0x58] sm:$0xff] 0.0
    %34 = vst [vmem:[#allocation2 + $0x60] sm:$0xff] 0.0
    %35 = vst [vmem:[#allocation2 + $0x68] sm:$0xff] 0.0
    %36 = vst [vmem:[#allocation2 + $0x70] sm:$0xff] 0.0
    %37 = vst [vmem:[#allocation2 + $0x78] sm:$0xff] 0.0
  $region21: #{bottleneck_forward.6} parent=0 // pred_fallthru
    _
  %v38 = vld [vmem:[#allocation2] sm:$0xff]
  %v39 = vld [vmem:[#allocation2 + $0x8] sm:$0xff]
  %v40 = vld [vmem:[#allocation2 + $0x10] sm:$0xff]
  %v41 = vld [vmem:[#allocation2 + $0x18] sm:$0xff]
  %v42 = vld [vmem:[#allocation2 + $0x20] sm:$0xff]
  %v43 = vld [vmem:[#allocation2 + $0x28] sm:$0xff]
  %v44 = vld [vmem:[#allocation2 + $0x30] sm:$0xff]
  %v45 = vld [vmem:[#allocation2 + $0x38] sm:$0xff]
  %v46 = vld [vmem:[#allocation2 + $0x40] sm:$0xff]
  %v47 = vld [vmem:[#allocation2 + $0x48] sm:$0xff]
  %v48 = vld [vmem:[#allocation2 + $0x50] sm:$0xff]
  %v49 = vld [vmem:[#allocation2 + $0x58] sm:$0xff]
  %v50 = vld [vmem:[#allocation2 + $0x60] sm:$0xff]
  %v51 = vld [vmem:[#allocation2 + $0x68] sm:$0xff]
  %v52 = vld [vmem:[#allocation2 + $0x70] sm:$0xff]
  %v53 = vld [vmem:[#allocation2 + $0x78] sm:$0xff]
  %v54 = vld [vmem:[%s0] sm:$0xf]
  %v55 = vld [vmem:[%s0 + $0x4] sm:$0xf]
  %v56 = vld [vmem:[%s0 + $0x8] sm:$0xf]
  %v57 = vld [vmem:[%s0 + $0xc] sm:$0xf]
  %v58 = vld [vmem:[%s0 + $0x10] sm:$0xf]
  %v59 = vld [vmem:[%s0 + $0x14] sm:$0xf]
  %v60 = vld [vmem:[%s0 + $0x18] sm:$0xf]
  %v61 = vld [vmem:[%s0 + $0x1c] sm:$0xf]
  %v62 = vld [vmem:[%s0 + $0x20] sm:$0xf]
  %v63 = vld [vmem:[%s0 + $0x24] sm:$0xf]
  %v64 = vld [vmem:[%s0 + $0x28] sm:$0xf]
  %v65 = vld [vmem:[%s0 + $0x2c] sm:$0xf]
  %v66 = vld [vmem:[%s0 + $0x30] sm:$0xf]
  %v67 = vld [vmem:[%s0 + $0x34] sm:$0xf]
  %v68 = vld [vmem:[%s0 + $0x38] sm:$0xf]
  %v69 = vld [vmem:[%s0 + $0x3c] sm:$0xf]
  %v70 = vld [vmem:[%s1] sm:$0xf]
  %v71 = vld [vmem:[%s1 + $0x4] sm:$0xf]
  %v72 = vld [vmem:[%s1 + $0x8] sm:$0xf]
  %v73 = vld [vmem:[%s1 + $0xc] sm:$0xf]
  %v74 = vld [vmem:[%s1 + $0x10] sm:$0xf]
  %v75 = vld [vmem:[%s1 + $0x14] sm:$0xf]
  %v76 = vld [vmem:[%s1 + $0x18] sm:$0xf]
  %v77 = vld [vmem:[%s1 + $0x1c] sm:$0xf]
  %v78 = vld [vmem:[%s1 + $0x20] sm:$0xf]
  %v79 = vld [vmem:[%s1 + $0x24] sm:$0xf]
  %v80 = vld [vmem:[%s1 + $0x28] sm:$0xf]
  %v81 = vld [vmem:[%s1 + $0x2c] sm:$0xf]
  %v82 = vld [vmem:[%s1 + $0x30] sm:$0xf]
  %v83 = vld [vmem:[%s1 + $0x34] sm:$0xf]
  %v84 = vld [vmem:[%s1 + $0x38] sm:$0xf]
  %v85 = vld [vmem:[%s1 + $0x3c] sm:$0xf]
  %v102 = vunpack.c.l.b16 %v54
  %v103 = vunpack.c.l.b16 %v55
  %v104 = vunpack.c.l.b16 %v56
  %v105 = vunpack.c.l.b16 %v57
  %v106 = vunpack.c.l.b16 %v58
  %v107 = vunpack.c.l.b16 %v59
  %v108 = vunpack.c.l.b16 %v60
  %v109 = vunpack.c.l.b16 %v61
  %v110 = vunpack.c.l.b16 %v62
  %v111 = vunpack.c.l.b16 %v63
  %v112 = vunpack.c.l.b16 %v64
  %v113 = vunpack.c.l.b16 %v65
  %v114 = vunpack.c.l.b16 %v66
  %v115 = vunpack.c.l.b16 %v67
  %v116 = vunpack.c.l.b16 %v68
  %v117 = vunpack.c.l.b16 %v69
  %v118 = vpack.c.b16 %v103, %v102
  %v119 = vpack.c.b16 %v105, %v104
  %v120 = vpack.c.b16 %v107, %v106
  %v121 = vpack.c.b16 %v109, %v108
  %v122 = vpack.c.b16 %v111, %v110
  %v123 = vpack.c.b16 %v113, %v112
  %v124 = vpack.c.b16 %v115, %v114
  %v125 = vpack.c.b16 %v117, %v116
  %v150 = vunpack.c.l.b16 %v70
  %v151 = vunpack.c.l.b16 %v71
  %v152 = vunpack.c.l.b16 %v72
  %v153 = vunpack.c.l.b16 %v73
  %v154 = vunpack.c.l.b16 %v74
  %v155 = vunpack.c.l.b16 %v75
  %v156 = vunpack.c.l.b16 %v76
  %v157 = vunpack.c.l.b16 %v77
  %v158 = vunpack.c.l.b16 %v78
  %v159 = vunpack.c.l.b16 %v79
  %v160 = vunpack.c.l.b16 %v80
  %v161 = vunpack.c.l.b16 %v81
  %v162 = vunpack.c.l.b16 %v82
  %v163 = vunpack.c.l.b16 %v83
  %v164 = vunpack.c.l.b16 %v84
  %v165 = vunpack.c.l.b16 %v85
  %v166 = vpack.c.b16 %v151, %v150
  %v167 = vpack.c.b16 %v153, %v152
  %v168 = vpack.c.b16 %v155, %v154
  %v169 = vpack.c.b16 %v157, %v156
  %v170 = vpack.c.b16 %v159, %v158
  %v171 = vpack.c.b16 %v161, %v160
  %v172 = vpack.c.b16 %v163, %v162
  %v173 = vpack.c.b16 %v165, %v164
  %182 = vmatprep.subr.bf16.mxu0 0
  %183 = vmatpush1.bf16.msra.mxu0 %v173
  %184 = vmatprep.subr.bf16.mxu0 0
  %185 = vmatpush1.bf16.msra.mxu0 %v172
  %186 = vmatprep.subr.bf16.mxu0 0
  %187 = vmatpush1.bf16.msra.mxu0 %v171
  %188 = vmatprep.subr.bf16.mxu0 0
  %189 = vmatpush1.bf16.msra.mxu0 %v170
  %190 = vmatprep.subr.bf16.mxu0 0
  %191 = vmatpush1.bf16.msra.mxu0 %v169
  %192 = vmatprep.subr.bf16.mxu0 0
  %193 = vmatpush1.bf16.msra.mxu0 %v168
  %194 = vmatprep.subr.bf16.mxu0 0
  %195 = vmatpush1.bf16.msra.mxu0 %v167
  %196 = vmatprep.subr.bf16.mxu0 0
  %197 = vmatpush1.bf16.msra.mxu0 %v166
  %198 = vmatprep.subr.bf16.mxu0 0
  %199 = vmatpush2.bf16.msra.mxu0 0
  %200 = vmatprep.subr.bf16.mxu0 0
  %201 = vmatpush2.bf16.msra.mxu0 0
  %202 = vmatprep.subr.bf16.mxu0 0
  %203 = vmatpush2.bf16.msra.mxu0 0
  %204 = vmatprep.subr.bf16.mxu0 0
  %205 = vmatpush2.bf16.msra.mxu0 0
  %206 = vmatprep.subr.bf16.mxu0 0
  %207 = vmatpush2.bf16.msra.mxu0 0
  %208 = vmatprep.subr.bf16.mxu0 0
  %209 = vmatpush2.bf16.msra.mxu0 0
  %210 = vmatprep.subr.bf16.mxu0 0
  %211 = vmatpush2.bf16.msra.mxu0 0
  %212 = vmatprep.subr.bf16.mxu0 0
  %213 = vmatpush2.bf16.msra.mxu0 0
  %214 = vmatprep.mubr.bf16.mxu0 0
  %215 = vmatmul.mubr.bf16.gmra.mxu0 %v118
  %v216 = vpop.f32.mrf.mxu0
  %v217 = vadd.f32 0.0, %v216
  %v218 = vpop.f32.mrf.mxu0
  %v219 = vpop.f32.mrf.mxu0
  %v220 = vadd.f32 0.0, %v219
  %v221 = vpop.f32.mrf.mxu0
  %222 = vmatprep.mubr.bf16.mxu0 0
  %223 = vmatmul.mubr.bf16.gmra.mxu0 %v119
  %v224 = vpop.f32.mrf.mxu0
  %v225 = vadd.f32 0.0, %v224
  %v226 = vpop.f32.mrf.mxu0
  %v227 = vpop.f32.mrf.mxu0
  %v228 = vadd.f32 0.0, %v227
  %v229 = vpop.f32.mrf.mxu0
  %230 = vmatprep.mubr.bf16.mxu0 0
  %231 = vmatmul.mubr.bf16.gmra.mxu0 %v120
  %v232 = vpop.f32.mrf.mxu0
  %v233 = vadd.f32 0.0, %v232
  %v234 = vpop.f32.mrf.mxu0
  %v235 = vpop.f32.mrf.mxu0
  %v236 = vadd.f32 0.0, %v235
  %v237 = vpop.f32.mrf.mxu0
  %238 = vmatprep.mubr.bf16.mxu0 0
  %239 = vmatmul.mubr.bf16.gmra.mxu0 %v121
  %v240 = vpop.f32.mrf.mxu0
  %v241 = vadd.f32 0.0, %v240
  %v242 = vpop.f32.mrf.mxu0
  %v243 = vpop.f32.mrf.mxu0
  %v244 = vadd.f32 0.0, %v243
  %v245 = vpop.f32.mrf.mxu0
  %246 = vmatprep.mubr.bf16.mxu0 0
  %247 = vmatmul.mubr.bf16.gmra.mxu0 %v122
  %v248 = vpop.f32.mrf.mxu0
  %v249 = vadd.f32 0.0, %v248
  %v250 = vpop.f32.mrf.mxu0
  %v251 = vpop.f32.mrf.mxu0
  %v252 = vadd.f32 0.0, %v251
  %v253 = vpop.f32.mrf.mxu0
  %254 = vmatprep.mubr.bf16.mxu0 0
  %255 = vmatmul.mubr.bf16.gmra.mxu0 %v123
  %v256 = vpop.f32.mrf.mxu0
  %v257 = vadd.f32 0.0, %v256
  %v258 = vpop.f32.mrf.mxu0
  %v259 = vpop.f32.mrf.mxu0
  %v260 = vadd.f32 0.0, %v259
  %v261 = vpop.f32.mrf.mxu0
  %262 = vmatprep.mubr.bf16.mxu0 0
  %263 = vmatmul.mubr.bf16.gmra.mxu0 %v124
  %v264 = vpop.f32.mrf.mxu0
  %v265 = vadd.f32 0.0, %v264
  %v266 = vpop.f32.mrf.mxu0
  %v267 = vpop.f32.mrf.mxu0
  %v268 = vadd.f32 0.0, %v267
  %v269 = vpop.f32.mrf.mxu0
  %270 = vmatprep.mubr.bf16.mxu0 0
  %271 = vmatmul.mubr.bf16.gmra.mxu0 %v125
  %v272 = vpop.f32.mrf.mxu0
  %v273 = vadd.f32 0.0, %v272
  %v274 = vpop.f32.mrf.mxu0
  %v275 = vpop.f32.mrf.mxu0
  %v276 = vadd.f32 0.0, %v275
  %v277 = vpop.f32.mrf.mxu0
  %278 = vdwg.mxu0
  %v279 = vadd.f32 %v38, %v217
  %v280 = vadd.f32 %v39, %v220
  %v281 = vadd.f32 %v40, %v225
  %v282 = vadd.f32 %v41, %v228
  %v283 = vadd.f32 %v42, %v233
  %v284 = vadd.f32 %v43, %v236
  %v285 = vadd.f32 %v44, %v241
  %v286 = vadd.f32 %v45, %v244
  %v287 = vadd.f32 %v46, %v249
  %v288 = vadd.f32 %v47, %v252
  %v289 = vadd.f32 %v48, %v257
  %v290 = vadd.f32 %v49, %v260
  %v291 = vadd.f32 %v50, %v265
  %v292 = vadd.f32 %v51, %v268
  %v293 = vadd.f32 %v52, %v273
  %v294 = vadd.f32 %v53, %v276
  %295 = vst [vmem:[#allocation2] sm:$0xff] %v279
  %296 = vst [vmem:[#allocation2 + $0x8] sm:$0xff] %v280
  %297 = vst [vmem:[#allocation2 + $0x10] sm:$0xff] %v281
  %298 = vst [vmem:[#allocation2 + $0x18] sm:$0xff] %v282
  %299 = vst [vmem:[#allocation2 + $0x20] sm:$0xff] %v283
  %300 = vst [vmem:[#allocation2 + $0x28] sm:$0xff] %v284
  %301 = vst [vmem:[#allocation2 + $0x30] sm:$0xff] %v285
  %302 = vst [vmem:[#allocation2 + $0x38] sm:$0xff] %v286
  %303 = vst [vmem:[#allocation2 + $0x40] sm:$0xff] %v287
  %304 = vst [vmem:[#allocation2 + $0x48] sm:$0xff] %v288
  %305 = vst [vmem:[#allocation2 + $0x50] sm:$0xff] %v289
  %306 = vst [vmem:[#allocation2 + $0x58] sm:$0xff] %v290
  %307 = vst [vmem:[#allocation2 + $0x60] sm:$0xff] %v291
  %308 = vst [vmem:[#allocation2 + $0x68] sm:$0xff] %v292
  %309 = vst [vmem:[#allocation2 + $0x70] sm:$0xff] %v293
  %310 = vst [vmem:[#allocation2 + $0x78] sm:$0xff] %v294
  // Predicated region
  $region22: #{bottleneck_forward.6} parent=0 // pred_check
    %p311 = pneg %p18
  $region23: #{bottleneck_forward.6} parent=0 // pred_check_branch
    %313 = sbr.rel (%p311) target = $region25
  $region24: #{bottleneck_forward.6} parent=0 // pred_region
    %v314 = vld [vmem:[#allocation2] sm:$0xff]
    %v315 = vld [vmem:[#allocation2 + $0x8] sm:$0xff]
    %v316 = vld [vmem:[#allocation2 + $0x10] sm:$0xff]
    %v317 = vld [vmem:[#allocation2 + $0x18] sm:$0xff]
    %v318 = vld [vmem:[#allocation2 + $0x20] sm:$0xff]
    %v319 = vld [vmem:[#allocation2 + $0x28] sm:$0xff]
    %v320 = vld [vmem:[#allocation2 + $0x30] sm:$0xff]
    %v321 = vld [vmem:[#allocation2 + $0x38] sm:$0xff]
    %v322 = vld [vmem:[#allocation2 + $0x40] sm:$0xff]
    %v323 = vld [vmem:[#allocation2 + $0x48] sm:$0xff]
    %v324 = vld [vmem:[#allocation2 + $0x50] sm:$0xff]
    %v325 = vld [vmem:[#allocation2 + $0x58] sm:$0xff]
    %v326 = vld [vmem:[#allocation2 + $0x60] sm:$0xff]
    %v327 = vld [vmem:[#allocation2 + $0x68] sm:$0xff]
    %v328 = vld [vmem:[#allocation2 + $0x70] sm:$0xff]
    %v329 = vld [vmem:[#allocation2 + $0x78] sm:$0xff]
    %v330 = vld [vmem:[%s2] sm:$0x1]
    %v332 = vlaneseq
    %v333 = vshrl.u32 %v332, 7
    %v334 = vsub.s32 0, %v333
    %v335 = vrot.slane %v330, %v334
    %v337 = vmul.f32 %v314, %v335
    %v338 = vmul.f32 %v315, %v335
    %v339 = vmul.f32 %v316, %v335
    %v340 = vmul.f32 %v317, %v335
    %v341 = vmul.f32 %v318, %v335
    %v342 = vmul.f32 %v319, %v335
    %v343 = vmul.f32 %v320, %v335
    %v344 = vmul.f32 %v321, %v335
    %v345 = vmul.f32 %v322, %v335
    %v346 = vmul.f32 %v323, %v335
    %v347 = vmul.f32 %v324, %v335
    %v348 = vmul.f32 %v325, %v335
    %v349 = vmul.f32 %v326, %v335
    %v350 = vmul.f32 %v327, %v335
    %v351 = vmul.f32 %v328, %v335
    %v352 = vmul.f32 %v329, %v335
    %v353 = vld [vmem:[%s3] sm:$0x1]
    %v355 = vlaneseq
    %v356 = vshrl.u32 %v355, 7
    %v357 = vsub.s32 0, %v356
    %v358 = vrot.slane %v353, %v357
    %v360 = vadd.f32 %v337, %v358
    %v361 = vadd.f32 %v338, %v358
    %v362 = vadd.f32 %v339, %v358
    %v363 = vadd.f32 %v340, %v358
    %v364 = vadd.f32 %v341, %v358
    %v365 = vadd.f32 %v342, %v358
    %v366 = vadd.f32 %v343, %v358
    %v367 = vadd.f32 %v344, %v358
    %v368 = vadd.f32 %v345, %v358
    %v369 = vadd.f32 %v346, %v358
    %v370 = vadd.f32 %v347, %v358
    %v371 = vadd.f32 %v348, %v358
    %v372 = vadd.f32 %v349, %v358
    %v373 = vadd.f32 %v350, %v358
    %v374 = vadd.f32 %v351, %v358
    %v375 = vadd.f32 %v352, %v358
    %376 = vst [vmem:[%s4] sm:$0xff] %v360
    %377 = vst [vmem:[%s4 + $0x8] sm:$0xff] %v361
    %378 = vst [vmem:[%s4 + $0x10] sm:$0xff] %v362
    %379 = vst [vmem:[%s4 + $0x18] sm:$0xff] %v363
    %380 = vst [vmem:[%s4 + $0x20] sm:$0xff] %v364
    %381 = vst [vmem:[%s4 + $0x28] sm:$0xff] %v365
    %382 = vst [vmem:[%s4 + $0x30] sm:$0xff] %v366
    %383 = vst [vmem:[%s4 + $0x38] sm:$0xff] %v367
    %384 = vst [vmem:[%s4 + $0x40] sm:$0xff] %v368
    %385 = vst [vmem:[%s4 + $0x48] sm:$0xff] %v369
    %386 = vst [vmem:[%s4 + $0x50] sm:$0xff] %v370
    %387 = vst [vmem:[%s4 + $0x58] sm:$0xff] %v371
    %388 = vst [vmem:[%s4 + $0x60] sm:$0xff] %v372
    %389 = vst [vmem:[%s4 + $0x68] sm:$0xff] %v373
    %390 = vst [vmem:[%s4 + $0x70] sm:$0xff] %v374
    %391 = vst [vmem:[%s4 + $0x78] sm:$0xff] %v375
  $region25: #{bottleneck_forward.6} parent=0 // pred_fallthru
    _
  // Predicated region
  $region26: #{bottleneck_forward.6} parent=0 // pred_check
    _
  $region27: #{bottleneck_forward.6} parent=0 // pred_check_branch
    %393 = sbr.rel (0) target = $region29
  $region28: #{bottleneck_forward.6} parent=0 // pred_region
    _
  $region29: #{bottleneck_forward.6} parent=0 // pred_fallthru
    _
  // Predicated region
  $region30: #{bottleneck_forward.6} parent=0 // pred_check
    _
  $region31: #{bottleneck_forward.6} parent=0 // pred_check_branch
    %395 = sbr.rel (0) target = $region33
  $region32: #{bottleneck_forward.6} parent=0 // pred_region
    _
  $region33: #{bottleneck_forward.6} parent=0 // pred_fallthru
    _

</llo_original>
